<compile_context>
chip_gen: v7x
topology: tpu7x:2x2x1
jax: 0.10.0
libtpu: 0.0.40
codegen_flags: <defaults>
</compile_context>

<pallas_src>
import functools

import jax
import jax.numpy as jnp
import numpy as np
from jax import lax
from jax.experimental import pallas as pl
from jax.experimental.pallas import tpu as pltpu


# ----------------------------- Pallas kernel ------------------------------- #

def _layer_norm(x, gamma, beta, eps=1e-5):
    mean = jnp.mean(x, axis=-1, keepdims=True)
    var = jnp.mean((x - mean) ** 2, axis=-1, keepdims=True)
    return (x - mean) * lax.rsqrt(var + eps) * gamma + beta


def graphormer_layer_kernel(
    x_ref, c_ref, gidr_ref, gidc_ref,
    ln1g_ref, ln1b_ref, ln2g_ref, ln2b_ref,
    wqkv_ref, bqkv_ref, wo_ref, bo_ref, wff_ref, bff_ref,
    out_ref,
    *, n_heads, dim_k,
):
    hk = n_heads * dim_k

    x = x_ref[...]
    # h = LN1(x), cast to bf16 once for all MXU uses.
    h_ln = _layer_norm(x, ln1g_ref[...], ln1b_ref[...])
    h_bf = h_ln.astype(jnp.bfloat16)

    # Fused QKV projection for ALL heads: one [N, D] x [D, 3*H*dk] matmul.
    # Column layout: [ q(all heads) | k(all heads) | v(all heads) ], each group
    # H*dk = 128 lanes wide (lane-aligned).
    qkv = jnp.dot(h_bf, wqkv_ref[...],
                  preferred_element_type=jnp.float32) + bqkv_ref[...]
    q_all = qkv[:, 0 * hk:1 * hk]
    k_all = qkv[:, 1 * hk:2 * hk]
    v_all = qkv[:, 2 * hk:3 * hk]

    # In-graph mask rebuilt from per-node graph ids (one VPU compare).
    in_graph = gidc_ref[...] == gidr_ref[...]          # [N,1] == [1,N] -> [N,N]
    maskf = in_graph.astype(jnp.float32)

    scale = 1.0 / (dim_k ** 0.5)
    heads = []
    for h in range(n_heads):                            # static unroll, H small
        q = q_all[:, h * dim_k:(h + 1) * dim_k].astype(jnp.bfloat16)
        k = k_all[:, h * dim_k:(h + 1) * dim_k].astype(jnp.bfloat16)
        v = v_all[:, h * dim_k:(h + 1) * dim_k].astype(jnp.bfloat16)

        # q @ k^T via dot_general (contract over dim_k, no materialized T).
        s = lax.dot_general(q, k, (((1,), (1,)), ((), ())),
                            preferred_element_type=jnp.float32) * scale
        # torch compute_a only fills the within-graph (block-diagonal) entries.
        s = s * maskf
        # b was folded into c in the glue; upcast bf16 c -> f32 here.
        logits = s + c_ref[h].astype(jnp.float32)
        # torch: (a + b + c) * batch_mask_neg_inf  (1 in-graph, -1e6 cross)
        logits = jnp.where(in_graph, logits, logits * -1_000_000.0)

        m = jnp.max(logits, axis=-1, keepdims=True)
        p = jnp.exp(logits - m)
        inv = pl.reciprocal(jnp.sum(p, axis=-1, keepdims=True), approx=True)
        sm = (p * inv) * maskf      # torch: softmax(a, -1) * batch_mask_zeros

        heads.append(jnp.dot(sm.astype(jnp.bfloat16), v,
                             preferred_element_type=jnp.float32))

    # One fused output projection: [N, H*dk] x [H*dk, D].
    heads_cat = jnp.concatenate(heads, axis=-1).astype(jnp.bfloat16)
    attn = jnp.dot(heads_cat, wo_ref[...],
                   preferred_element_type=jnp.float32) + bo_ref[...]
    x_prime = attn + x

    # Epilogue: LN2 -> FFN -> residual.
    h2 = _layer_norm(x_prime, ln2g_ref[...], ln2b_ref[...])
    ff = jnp.dot(h2.astype(jnp.bfloat16), wff_ref[...],
                 preferred_element_type=jnp.float32) + bff_ref[...]
    out_ref[...] = ff + x_prime


def graphormer_encoder_layer(x, c_with_b, graph_id, params, *, n_heads, dim_k):
    N, D = x.shape
    H = n_heads
    hk = H * dim_k

    # Fused QKV weights [D, 3*H*dk]: groups [q_all | k_all | v_all], each group
    # laid out head-major so head h occupies lanes h*dk:(h+1)*dk of its group.
    def fuse_w(w):   # [H, D, dk] -> [D, H*dk]
        return jnp.transpose(w, (1, 0, 2)).reshape(D, hk)

    def fuse_b(b):   # [H, 1, dk] -> [1, H*dk]
        return jnp.transpose(b, (1, 0, 2)).reshape(1, hk)

    wqkv = jnp.concatenate(
        [fuse_w(params["wq"]), fuse_w(params["wk"]), fuse_w(params["wv"])],
        axis=-1).astype(jnp.bfloat16)                       # [D, 3*H*dk]
    bqkv = jnp.concatenate(
        [fuse_b(params["bq"]), fuse_b(params["bk"]), fuse_b(params["bv"])],
        axis=-1)                                            # [1, 3*H*dk] f32
    wo = params["wo"].astype(jnp.bfloat16)                  # [H*dk, D]
    wff = params["wff"].astype(jnp.bfloat16)                # [D, D]

    gid_row = graph_id.reshape(1, N).astype(jnp.int32)
    gid_col = graph_id.reshape(N, 1).astype(jnp.int32)

    args = (
        x, c_with_b, gid_row, gid_col,
        params["ln1_g"], params["ln1_b"], params["ln2_g"], params["ln2_b"],
        wqkv, bqkv, wo, params["bo"], wff, params["bff"],
    )

    kern = functools.partial(graphormer_layer_kernel, n_heads=H, dim_k=dim_k)

    grid_spec = pltpu.PrefetchScalarGridSpec(
        num_scalar_prefetch=0,
        grid=(1,),                                    # single fused step
        in_specs=[
            pl.BlockSpec((N, D), lambda i: (0, 0)),             # x
            pl.BlockSpec((H, N, N), lambda i: (0, 0, 0)),       # c (bf16, b folded)
            pl.BlockSpec((1, N), lambda i: (0, 0)),             # graph id (row)
            pl.BlockSpec((N, 1), lambda i: (0, 0)),             # graph id (col)
            pl.BlockSpec((1, D), lambda i: (0, 0)),             # ln1 gamma
            pl.BlockSpec((1, D), lambda i: (0, 0)),             # ln1 beta
            pl.BlockSpec((1, D), lambda i: (0, 0)),             # ln2 gamma
            pl.BlockSpec((1, D), lambda i: (0, 0)),             # ln2 beta
            pl.BlockSpec((D, 3 * hk), lambda i: (0, 0)),        # wqkv (bf16)
            pl.BlockSpec((1, 3 * hk), lambda i: (0, 0)),        # bqkv
            pl.BlockSpec((hk, D), lambda i: (0, 0)),            # wo (bf16)
            pl.BlockSpec((1, D), lambda i: (0, 0)),             # bo
            pl.BlockSpec((D, D), lambda i: (0, 0)),             # wff (bf16)
            pl.BlockSpec((1, D), lambda i: (0, 0)),             # bff
        ],
        out_specs=pl.BlockSpec((N, D), lambda i: (0, 0)),
        scratch_shapes=[],
    )

    flops = (2 * N * D * 3 * hk            # fused QKV
             + H * (4 * N * N * dim_k)     # scores + softmax@V
             + 2 * N * hk * D              # output projection
             + 2 * N * D * D)              # FFN
    bytes_accessed = int(sum(int(a.size) * a.dtype.itemsize for a in args)
                         + N * D * 4)
    cost = pl.CostEstimate(flops=flops,
                           transcendentals=H * N * N,
                           bytes_accessed=bytes_accessed)

    return pl.pallas_call(
        kern,
        out_shape=jax.ShapeDtypeStruct((N, D), jnp.float32),
        grid_spec=grid_spec,
        cost_estimate=cost,
        compiler_params=pltpu.CompilerParams(
            dimension_semantics=("arbitrary",),
            vmem_limit_bytes=32 * 1024 * 1024,
        ),
    )(*args)


# ------------------------------- JAX glue ---------------------------------- #

def build_graph_id(n_nodes, ptr):
    """Per-node graph-id vector (replaces the dense [N,N] torch masks)."""
    gid = np.zeros((n_nodes,), np.int32)
    if ptr is not None:
        for i in range(len(ptr) - 1):
            gid[ptr[i]:ptr[i + 1]] = i
    return jnp.asarray(gid)


def build_path_arrays(n_nodes, edge_paths, max_path_distance):
    """Pack the python dict-of-dicts of edge paths into dense padded arrays."""
    path_idx = np.zeros((n_nodes, n_nodes, max_path_distance), np.int32)
    path_mask = np.zeros((n_nodes, n_nodes, max_path_distance), np.float32)
    for src in edge_paths:
        for dst in edge_paths[src]:
            p = edge_paths[src][dst][:max_path_distance]
            for i, e in enumerate(p):
                path_idx[src, dst, i] = e
                path_mask[src, dst, i] = 1.0
    return jnp.asarray(path_idx), jnp.asarray(path_mask)


def edge_encoding_c_all(edge_vectors, edge_attr, path_idx, path_mask):
    """EdgeEncoding.forward for all heads with one batched einsum -> [H, N, N]."""
    gathered = edge_attr[path_idx] * path_mask[..., None]          # [N, N, P, E]
    s = jnp.einsum("nmpe,hpe->hnm", gathered, edge_vectors)        # [H, N, N]
    cnt = jnp.sum(path_mask, axis=-1)                              # [N, N]
    # mean over actual path length; absent/empty paths -> 0 (torch.nan_to_num)
    return jnp.where(cnt > 0, s / jnp.maximum(cnt, 1.0), 0.0)


# --------------------------------- main ------------------------------------ #

if __name__ == "__main__":
    # small, module-consistent shapes
    N = 8            # number of nodes
    D = 32           # node_dim (= dim_q = dim_k)
    E = 16           # edge_dim
    H = 4            # n_heads
    P = 5            # max_path_distance
    M = 10           # number of edges

    key = jax.random.PRNGKey(0)
    ks = jax.random.split(key, 12)

    x = jax.random.normal(ks[0], (N, D), jnp.float32)
    edge_attr = jax.random.normal(ks[1], (M, E), jnp.float32)
    b_sp = jax.random.normal(ks[2], (N, N), jnp.float32) * 0.1

    # two graphs of 4 nodes each
    ptr = [0, 4, 8]
    graph_id = build_graph_id(N, ptr)

    # pairwise node paths expressed as lists of edge indices
    edge_paths = {
        0: {1: [0], 2: [0, 1], 3: [0, 1, 2]},
        1: {2: [1], 3: [1, 2]},
        2: {3: [2]},
        3: {0: [3, 4]},
        4: {5: [5], 6: [5, 6], 7: [5, 6, 7]},
        5: {6: [6], 7: [6, 7]},
        6: {7: [7], 4: [8]},
        7: {4: [9]},
    }
    path_idx, path_mask = build_path_arrays(N, edge_paths, P)

    # deterministic parameter init (per-head params stacked on leading H axis)
    params = {
        "ln1_g": jnp.ones((1, D), jnp.float32),
        "ln1_b": jnp.zeros((1, D), jnp.float32),
        "ln2_g": jnp.ones((1, D), jnp.float32),
        "ln2_b": jnp.zeros((1, D), jnp.float32),
        # q/k/v linear weights stored as [in, out] (already transposed vs torch)
        "wq": jax.random.normal(ks[3], (H, D, D), jnp.float32) * 0.1,
        "bq": jax.random.normal(ks[4], (H, 1, D), jnp.float32) * 0.1,
        "wk": jax.random.normal(ks[5], (H, D, D), jnp.float32) * 0.1,
        "bk": jax.random.normal(ks[6], (H, 1, D), jnp.float32) * 0.1,
        "wv": jax.random.normal(ks[7], (H, D, D), jnp.float32) * 0.1,
        "bv": jax.random.normal(ks[8], (H, 1, D), jnp.float32) * 0.1,
        "wo": jax.random.normal(ks[9], (H * D, D), jnp.float32) * 0.1,
        "bo": jnp.zeros((1, D), jnp.float32),
        "wff": jax.random.normal(ks[10], (D, D), jnp.float32) * 0.1,
        "bff": jnp.zeros((1, D), jnp.float32),
    }
    edge_vectors = jax.random.normal(ks[11], (H, P, E), jnp.float32)

    # EdgeEncoding for all heads in one batched einsum; fold the spatial
    # encoding b into c and store the fused bias stream in bf16.
    # (The dict-of-paths gather is data-dependent, so it stays outside the kernel.)
    c_all = edge_encoding_c_all(edge_vectors, edge_attr, path_idx, path_mask)
    c_with_b = (c_all + b_sp[None, :, :]).astype(jnp.bfloat16)     # [H, N, N]

    out = graphormer_encoder_layer(
        x, c_with_b, graph_id, params, n_heads=H, dim_k=D,
    )
    out = jax.block_until_ready(out)
    assert out.shape == (N, D) and bool(jnp.all(jnp.isfinite(out)))
    print("KERNEL_OK")
</pallas_src>

<mosaic_0001>
module attributes {stable_mosaic.version = 11 : i64} {
  func.func @graphormer_layer_kernel(%arg0: i32, %arg1: memref<8x32xf32, #tpu.memory_space<vmem>>, %arg2: memref<4x8x8xbf16, #tpu.memory_space<vmem>>, %arg3: memref<1x8xi32, #tpu.memory_space<vmem>>, %arg4: memref<8x1xi32, #tpu.memory_space<vmem>>, %arg5: memref<1x32xf32, #tpu.memory_space<vmem>>, %arg6: memref<1x32xf32, #tpu.memory_space<vmem>>, %arg7: memref<1x32xf32, #tpu.memory_space<vmem>>, %arg8: memref<1x32xf32, #tpu.memory_space<vmem>>, %arg9: memref<32x384xbf16, #tpu.memory_space<vmem>>, %arg10: memref<1x384xf32, #tpu.memory_space<vmem>>, %arg11: memref<128x32xbf16, #tpu.memory_space<vmem>>, %arg12: memref<1x32xf32, #tpu.memory_space<vmem>>, %arg13: memref<32x32xbf16, #tpu.memory_space<vmem>>, %arg14: memref<1x32xf32, #tpu.memory_space<vmem>>, %arg15: memref<8x32xf32, #tpu.memory_space<vmem>>) attributes {dimension_semantics = [#tpu.dimension_semantics<arbitrary>], iteration_bounds = array<i64: 1>, scalar_prefetch = 0 : i64, scratch_operands = 0 : i64, tpu.core_type = #tpu.core_type<tc>, window_params = [{pipeline_mode = #tpu.pipeline_mode<synchronous>, transform_indices = @transform_0, window_bounds = array<i64: 8, 32>}, {pipeline_mode = #tpu.pipeline_mode<synchronous>, transform_indices = @transform_1, window_bounds = array<i64: 4, 8, 8>}, {pipeline_mode = #tpu.pipeline_mode<synchronous>, transform_indices = @transform_2, window_bounds = array<i64: 1, 8>}, {pipeline_mode = #tpu.pipeline_mode<synchronous>, transform_indices = @transform_3, window_bounds = array<i64: 8, 1>}, {pipeline_mode = #tpu.pipeline_mode<synchronous>, transform_indices = @transform_4, window_bounds = array<i64: 1, 32>}, {pipeline_mode = #tpu.pipeline_mode<synchronous>, transform_indices = @transform_5, window_bounds = array<i64: 1, 32>}, {pipeline_mode = #tpu.pipeline_mode<synchronous>, transform_indices = @transform_6, window_bounds = array<i64: 1, 32>}, {pipeline_mode = #tpu.pipeline_mode<synchronous>, transform_indices = @transform_7, window_bounds = array<i64: 1, 32>}, {pipeline_mode = #tpu.pipeline_mode<synchronous>, transform_indices = @transform_8, window_bounds = array<i64: 32, 384>}, {pipeline_mode = #tpu.pipeline_mode<synchronous>, transform_indices = @transform_9, window_bounds = array<i64: 1, 384>}, {pipeline_mode = #tpu.pipeline_mode<synchronous>, transform_indices = @transform_10, window_bounds = array<i64: 128, 32>}, {pipeline_mode = #tpu.pipeline_mode<synchronous>, transform_indices = @transform_11, window_bounds = array<i64: 1, 32>}, {pipeline_mode = #tpu.pipeline_mode<synchronous>, transform_indices = @transform_12, window_bounds = array<i64: 32, 32>}, {pipeline_mode = #tpu.pipeline_mode<synchronous>, transform_indices = @transform_13, window_bounds = array<i64: 1, 32>}, {pipeline_mode = #tpu.pipeline_mode<synchronous>, transform_indices = @transform_14, window_bounds = array<i64: 8, 32>}]} {
    %c0 = arith.constant 0 : index
    %c0_0 = arith.constant 0 : index
    %0 = vector.load %arg1[%c0, %c0_0] : memref<8x32xf32, #tpu.memory_space<vmem>>, vector<8x32xf32>
    %c0_1 = arith.constant 0 : index
    %c0_2 = arith.constant 0 : index
    %1 = vector.load %arg5[%c0_1, %c0_2] : memref<1x32xf32, #tpu.memory_space<vmem>>, vector<1x32xf32>
    %c0_3 = arith.constant 0 : index
    %c0_4 = arith.constant 0 : index
    %2 = vector.load %arg6[%c0_3, %c0_4] : memref<1x32xf32, #tpu.memory_space<vmem>>, vector<1x32xf32>
    %cst = arith.constant dense<0.000000e+00> : vector<8xf32>
    %3 = vector.multi_reduction <add>, %0, %cst [1] : vector<8x32xf32> to vector<8xf32>
    %4 = vector.shape_cast %3 : vector<8xf32> to vector<8x1xf32>
    %cst_5 = arith.constant 3.200000e+01 : f32
    %5 = vector.broadcast %cst_5 : f32 to vector<8x1xf32>
    %6 = arith.divf %4, %5 : vector<8x1xf32>
    %7 = vector.broadcast %6 : vector<8x1xf32> to vector<8x32xf32>
    %8 = arith.subf %0, %7 : vector<8x32xf32>
    %9 = arith.mulf %8, %8 : vector<8x32xf32>
    %cst_6 = arith.constant dense<0.000000e+00> : vector<8xf32>
    %10 = vector.multi_reduction <add>, %9, %cst_6 [1] : vector<8x32xf32> to vector<8xf32>
    %11 = vector.shape_cast %10 : vector<8xf32> to vector<8x1xf32>
    %cst_7 = arith.constant 3.200000e+01 : f32
    %12 = vector.broadcast %cst_7 : f32 to vector<8x1xf32>
    %13 = arith.divf %11, %12 : vector<8x1xf32>
    %14 = vector.broadcast %6 : vector<8x1xf32> to vector<8x32xf32>
    %15 = arith.subf %0, %14 : vector<8x32xf32>
    %cst_8 = arith.constant 9.99999974E-6 : f32
    %16 = vector.broadcast %cst_8 : f32 to vector<8x1xf32>
    %17 = arith.addf %13, %16 : vector<8x1xf32>
    %18 = math.rsqrt %17 : vector<8x1xf32>
    %19 = vector.broadcast %18 : vector<8x1xf32> to vector<8x32xf32>
    %20 = arith.mulf %15, %19 : vector<8x32xf32>
    %21 = vector.broadcast %1 : vector<1x32xf32> to vector<8x32xf32>
    %22 = arith.mulf %20, %21 : vector<8x32xf32>
    %23 = vector.broadcast %2 : vector<1x32xf32> to vector<8x32xf32>
    %24 = arith.addf %22, %23 : vector<8x32xf32>
    %25 = arith.truncf %24 : vector<8x32xf32> to vector<8x32xbf16>
    %c0_9 = arith.constant 0 : index
    %c0_10 = arith.constant 0 : index
    %26 = vector.load %arg9[%c0_9, %c0_10] : memref<32x384xbf16, #tpu.memory_space<vmem>>, vector<32x384xbf16>
    %cst_11 = arith.constant dense<0.000000e+00> : vector<8x384xf32>
    %27 = tpu.matmul %25, %26, %cst_11 {dimension_numbers = #tpu.dot_dimension_numbers<[1], [0], [0], [1], [0, 0, 1, 1], [], []>} : vector<8x32xbf16>, vector<32x384xbf16>, vector<8x384xf32> -> vector<8x384xf32>
    %c0_12 = arith.constant 0 : index
    %c0_13 = arith.constant 0 : index
    %28 = vector.load %arg10[%c0_12, %c0_13] : memref<1x384xf32, #tpu.memory_space<vmem>>, vector<1x384xf32>
    %29 = vector.broadcast %28 : vector<1x384xf32> to vector<8x384xf32>
    %30 = arith.addf %27, %29 : vector<8x384xf32>
    %31 = vector.extract_strided_slice %30 {offsets = [0, 0], sizes = [8, 128], strides = [1, 1]} : vector<8x384xf32> to vector<8x128xf32>
    %32 = vector.extract_strided_slice %30 {offsets = [0, 128], sizes = [8, 128], strides = [1, 1]} : vector<8x384xf32> to vector<8x128xf32>
    %33 = vector.extract_strided_slice %30 {offsets = [0, 256], sizes = [8, 128], strides = [1, 1]} : vector<8x384xf32> to vector<8x128xf32>
    %c0_14 = arith.constant 0 : index
    %c0_15 = arith.constant 0 : index
    %34 = vector.load %arg4[%c0_14, %c0_15] : memref<8x1xi32, #tpu.memory_space<vmem>>, vector<8x1xi32>
    %c0_16 = arith.constant 0 : index
    %c0_17 = arith.constant 0 : index
    %35 = vector.load %arg3[%c0_16, %c0_17] : memref<1x8xi32, #tpu.memory_space<vmem>>, vector<1x8xi32>
    %36 = vector.broadcast %34 : vector<8x1xi32> to vector<8x8xi32>
    %37 = vector.broadcast %35 : vector<1x8xi32> to vector<8x8xi32>
    %38 = arith.cmpi eq, %36, %37 : vector<8x8xi32>
    %39 = arith.extui %38 : vector<8x8xi1> to vector<8x8xi32>
    %40 = arith.sitofp %39 : vector<8x8xi32> to vector<8x8xf32>
    %41 = vector.extract_strided_slice %31 {offsets = [0, 0], sizes = [8, 32], strides = [1, 1]} : vector<8x128xf32> to vector<8x32xf32>
    %42 = arith.truncf %41 : vector<8x32xf32> to vector<8x32xbf16>
    %43 = vector.extract_strided_slice %32 {offsets = [0, 0], sizes = [8, 32], strides = [1, 1]} : vector<8x128xf32> to vector<8x32xf32>
    %44 = arith.truncf %43 : vector<8x32xf32> to vector<8x32xbf16>
    %45 = vector.extract_strided_slice %33 {offsets = [0, 0], sizes = [8, 32], strides = [1, 1]} : vector<8x128xf32> to vector<8x32xf32>
    %46 = arith.truncf %45 : vector<8x32xf32> to vector<8x32xbf16>
    %cst_18 = arith.constant dense<0.000000e+00> : vector<8x8xf32>
    %47 = tpu.matmul %42, %44, %cst_18 {dimension_numbers = #tpu.dot_dimension_numbers<[1], [1], [0], [0], [0, 0, 1, 0], [], []>} : vector<8x32xbf16>, vector<8x32xbf16>, vector<8x8xf32> -> vector<8x8xf32>
    %cst_19 = arith.constant 0.176776692 : f32
    %48 = vector.broadcast %cst_19 : f32 to vector<8x8xf32>
    %49 = arith.mulf %47, %48 : vector<8x8xf32>
    %50 = arith.mulf %49, %40 : vector<8x8xf32>
    %c0_20 = arith.constant 0 : index
    %c0_21 = arith.constant 0 : index
    %c0_22 = arith.constant 0 : index
    %51 = vector.load %arg2[%c0_20, %c0_21, %c0_22] : memref<4x8x8xbf16, #tpu.memory_space<vmem>>, vector<1x8x8xbf16>
    %52 = vector.shape_cast %51 : vector<1x8x8xbf16> to vector<8x8xbf16>
    %53 = arith.extf %52 : vector<8x8xbf16> to vector<8x8xf32>
    %54 = arith.addf %50, %53 : vector<8x8xf32>
    %cst_23 = arith.constant -1.000000e+06 : f32
    %55 = vector.broadcast %cst_23 : f32 to vector<8x8xf32>
    %56 = arith.mulf %54, %55 : vector<8x8xf32>
    %57 = arith.select %38, %54, %56 : vector<8x8xi1>, vector<8x8xf32>
    %cst_24 = arith.constant dense<0xFF800000> : vector<8xf32>
    %58 = vector.multi_reduction <maximumf>, %57, %cst_24 [1] : vector<8x8xf32> to vector<8xf32>
    %59 = vector.shape_cast %58 : vector<8xf32> to vector<8x1xf32>
    %60 = vector.broadcast %59 : vector<8x1xf32> to vector<8x8xf32>
    %61 = arith.subf %57, %60 : vector<8x8xf32>
    %62 = math.exp %61 : vector<8x8xf32>
    %cst_25 = arith.constant dense<0.000000e+00> : vector<8xf32>
    %63 = vector.multi_reduction <add>, %62, %cst_25 [1] : vector<8x8xf32> to vector<8xf32>
    %64 = vector.shape_cast %63 : vector<8xf32> to vector<8x1xf32>
    %65 = tpu.reciprocal %64 {approx = true} : vector<8x1xf32> -> vector<8x1xf32>
    %66 = vector.broadcast %65 : vector<8x1xf32> to vector<8x8xf32>
    %67 = arith.mulf %62, %66 : vector<8x8xf32>
    %68 = arith.mulf %67, %40 : vector<8x8xf32>
    %69 = arith.truncf %68 : vector<8x8xf32> to vector<8x8xbf16>
    %cst_26 = arith.constant dense<0.000000e+00> : vector<8x32xf32>
    %70 = tpu.matmul %69, %46, %cst_26 {dimension_numbers = #tpu.dot_dimension_numbers<[1], [0], [0], [1], [0, 0, 1, 1], [], []>} : vector<8x8xbf16>, vector<8x32xbf16>, vector<8x32xf32> -> vector<8x32xf32>
    %71 = vector.extract_strided_slice %31 {offsets = [0, 32], sizes = [8, 32], strides = [1, 1]} : vector<8x128xf32> to vector<8x32xf32>
    %72 = arith.truncf %71 : vector<8x32xf32> to vector<8x32xbf16>
    %73 = vector.extract_strided_slice %32 {offsets = [0, 32], sizes = [8, 32], strides = [1, 1]} : vector<8x128xf32> to vector<8x32xf32>
    %74 = arith.truncf %73 : vector<8x32xf32> to vector<8x32xbf16>
    %75 = vector.extract_strided_slice %33 {offsets = [0, 32], sizes = [8, 32], strides = [1, 1]} : vector<8x128xf32> to vector<8x32xf32>
    %76 = arith.truncf %75 : vector<8x32xf32> to vector<8x32xbf16>
    %cst_27 = arith.constant dense<0.000000e+00> : vector<8x8xf32>
    %77 = tpu.matmul %72, %74, %cst_27 {dimension_numbers = #tpu.dot_dimension_numbers<[1], [1], [0], [0], [0, 0, 1, 0], [], []>} : vector<8x32xbf16>, vector<8x32xbf16>, vector<8x8xf32> -> vector<8x8xf32>
    %cst_28 = arith.constant 0.176776692 : f32
    %78 = vector.broadcast %cst_28 : f32 to vector<8x8xf32>
    %79 = arith.mulf %77, %78 : vector<8x8xf32>
    %80 = arith.mulf %79, %40 : vector<8x8xf32>
    %c1 = arith.constant 1 : index
    %c0_29 = arith.constant 0 : index
    %c0_30 = arith.constant 0 : index
    %81 = vector.load %arg2[%c1, %c0_29, %c0_30] : memref<4x8x8xbf16, #tpu.memory_space<vmem>>, vector<1x8x8xbf16>
    %82 = vector.shape_cast %81 : vector<1x8x8xbf16> to vector<8x8xbf16>
    %83 = arith.extf %82 : vector<8x8xbf16> to vector<8x8xf32>
    %84 = arith.addf %80, %83 : vector<8x8xf32>
    %cst_31 = arith.constant -1.000000e+06 : f32
    %85 = vector.broadcast %cst_31 : f32 to vector<8x8xf32>
    %86 = arith.mulf %84, %85 : vector<8x8xf32>
    %87 = arith.select %38, %84, %86 : vector<8x8xi1>, vector<8x8xf32>
    %cst_32 = arith.constant dense<0xFF800000> : vector<8xf32>
    %88 = vector.multi_reduction <maximumf>, %87, %cst_32 [1] : vector<8x8xf32> to vector<8xf32>
    %89 = vector.shape_cast %88 : vector<8xf32> to vector<8x1xf32>
    %90 = vector.broadcast %89 : vector<8x1xf32> to vector<8x8xf32>
    %91 = arith.subf %87, %90 : vector<8x8xf32>
    %92 = math.exp %91 : vector<8x8xf32>
    %cst_33 = arith.constant dense<0.000000e+00> : vector<8xf32>
    %93 = vector.multi_reduction <add>, %92, %cst_33 [1] : vector<8x8xf32> to vector<8xf32>
    %94 = vector.shape_cast %93 : vector<8xf32> to vector<8x1xf32>
    %95 = tpu.reciprocal %94 {approx = true} : vector<8x1xf32> -> vector<8x1xf32>
    %96 = vector.broadcast %95 : vector<8x1xf32> to vector<8x8xf32>
    %97 = arith.mulf %92, %96 : vector<8x8xf32>
    %98 = arith.mulf %97, %40 : vector<8x8xf32>
    %99 = arith.truncf %98 : vector<8x8xf32> to vector<8x8xbf16>
    %cst_34 = arith.constant dense<0.000000e+00> : vector<8x32xf32>
    %100 = tpu.matmul %99, %76, %cst_34 {dimension_numbers = #tpu.dot_dimension_numbers<[1], [0], [0], [1], [0, 0, 1, 1], [], []>} : vector<8x8xbf16>, vector<8x32xbf16>, vector<8x32xf32> -> vector<8x32xf32>
    %101 = vector.extract_strided_slice %31 {offsets = [0, 64], sizes = [8, 32], strides = [1, 1]} : vector<8x128xf32> to vector<8x32xf32>
    %102 = arith.truncf %101 : vector<8x32xf32> to vector<8x32xbf16>
    %103 = vector.extract_strided_slice %32 {offsets = [0, 64], sizes = [8, 32], strides = [1, 1]} : vector<8x128xf32> to vector<8x32xf32>
    %104 = arith.truncf %103 : vector<8x32xf32> to vector<8x32xbf16>
    %105 = vector.extract_strided_slice %33 {offsets = [0, 64], sizes = [8, 32], strides = [1, 1]} : vector<8x128xf32> to vector<8x32xf32>
    %106 = arith.truncf %105 : vector<8x32xf32> to vector<8x32xbf16>
    %cst_35 = arith.constant dense<0.000000e+00> : vector<8x8xf32>
    %107 = tpu.matmul %102, %104, %cst_35 {dimension_numbers = #tpu.dot_dimension_numbers<[1], [1], [0], [0], [0, 0, 1, 0], [], []>} : vector<8x32xbf16>, vector<8x32xbf16>, vector<8x8xf32> -> vector<8x8xf32>
    %cst_36 = arith.constant 0.176776692 : f32
    %108 = vector.broadcast %cst_36 : f32 to vector<8x8xf32>
    %109 = arith.mulf %107, %108 : vector<8x8xf32>
    %110 = arith.mulf %109, %40 : vector<8x8xf32>
    %c2 = arith.constant 2 : index
    %c0_37 = arith.constant 0 : index
    %c0_38 = arith.constant 0 : index
    %111 = vector.load %arg2[%c2, %c0_37, %c0_38] : memref<4x8x8xbf16, #tpu.memory_space<vmem>>, vector<1x8x8xbf16>
    %112 = vector.shape_cast %111 : vector<1x8x8xbf16> to vector<8x8xbf16>
    %113 = arith.extf %112 : vector<8x8xbf16> to vector<8x8xf32>
    %114 = arith.addf %110, %113 : vector<8x8xf32>
    %cst_39 = arith.constant -1.000000e+06 : f32
    %115 = vector.broadcast %cst_39 : f32 to vector<8x8xf32>
    %116 = arith.mulf %114, %115 : vector<8x8xf32>
    %117 = arith.select %38, %114, %116 : vector<8x8xi1>, vector<8x8xf32>
    %cst_40 = arith.constant dense<0xFF800000> : vector<8xf32>
    %118 = vector.multi_reduction <maximumf>, %117, %cst_40 [1] : vector<8x8xf32> to vector<8xf32>
    %119 = vector.shape_cast %118 : vector<8xf32> to vector<8x1xf32>
    %120 = vector.broadcast %119 : vector<8x1xf32> to vector<8x8xf32>
    %121 = arith.subf %117, %120 : vector<8x8xf32>
    %122 = math.exp %121 : vector<8x8xf32>
    %cst_41 = arith.constant dense<0.000000e+00> : vector<8xf32>
    %123 = vector.multi_reduction <add>, %122, %cst_41 [1] : vector<8x8xf32> to vector<8xf32>
    %124 = vector.shape_cast %123 : vector<8xf32> to vector<8x1xf32>
    %125 = tpu.reciprocal %124 {approx = true} : vector<8x1xf32> -> vector<8x1xf32>
    %126 = vector.broadcast %125 : vector<8x1xf32> to vector<8x8xf32>
    %127 = arith.mulf %122, %126 : vector<8x8xf32>
    %128 = arith.mulf %127, %40 : vector<8x8xf32>
    %129 = arith.truncf %128 : vector<8x8xf32> to vector<8x8xbf16>
    %cst_42 = arith.constant dense<0.000000e+00> : vector<8x32xf32>
    %130 = tpu.matmul %129, %106, %cst_42 {dimension_numbers = #tpu.dot_dimension_numbers<[1], [0], [0], [1], [0, 0, 1, 1], [], []>} : vector<8x8xbf16>, vector<8x32xbf16>, vector<8x32xf32> -> vector<8x32xf32>
    %131 = vector.extract_strided_slice %31 {offsets = [0, 96], sizes = [8, 32], strides = [1, 1]} : vector<8x128xf32> to vector<8x32xf32>
    %132 = arith.truncf %131 : vector<8x32xf32> to vector<8x32xbf16>
    %133 = vector.extract_strided_slice %32 {offsets = [0, 96], sizes = [8, 32], strides = [1, 1]} : vector<8x128xf32> to vector<8x32xf32>
    %134 = arith.truncf %133 : vector<8x32xf32> to vector<8x32xbf16>
    %135 = vector.extract_strided_slice %33 {offsets = [0, 96], sizes = [8, 32], strides = [1, 1]} : vector<8x128xf32> to vector<8x32xf32>
    %136 = arith.truncf %135 : vector<8x32xf32> to vector<8x32xbf16>
    %cst_43 = arith.constant dense<0.000000e+00> : vector<8x8xf32>
    %137 = tpu.matmul %132, %134, %cst_43 {dimension_numbers = #tpu.dot_dimension_numbers<[1], [1], [0], [0], [0, 0, 1, 0], [], []>} : vector<8x32xbf16>, vector<8x32xbf16>, vector<8x8xf32> -> vector<8x8xf32>
    %cst_44 = arith.constant 0.176776692 : f32
    %138 = vector.broadcast %cst_44 : f32 to vector<8x8xf32>
    %139 = arith.mulf %137, %138 : vector<8x8xf32>
    %140 = arith.mulf %139, %40 : vector<8x8xf32>
    %c3 = arith.constant 3 : index
    %c0_45 = arith.constant 0 : index
    %c0_46 = arith.constant 0 : index
    %141 = vector.load %arg2[%c3, %c0_45, %c0_46] : memref<4x8x8xbf16, #tpu.memory_space<vmem>>, vector<1x8x8xbf16>
    %142 = vector.shape_cast %141 : vector<1x8x8xbf16> to vector<8x8xbf16>
    %143 = arith.extf %142 : vector<8x8xbf16> to vector<8x8xf32>
    %144 = arith.addf %140, %143 : vector<8x8xf32>
    %cst_47 = arith.constant -1.000000e+06 : f32
    %145 = vector.broadcast %cst_47 : f32 to vector<8x8xf32>
    %146 = arith.mulf %144, %145 : vector<8x8xf32>
    %147 = arith.select %38, %144, %146 : vector<8x8xi1>, vector<8x8xf32>
    %cst_48 = arith.constant dense<0xFF800000> : vector<8xf32>
    %148 = vector.multi_reduction <maximumf>, %147, %cst_48 [1] : vector<8x8xf32> to vector<8xf32>
    %149 = vector.shape_cast %148 : vector<8xf32> to vector<8x1xf32>
    %150 = vector.broadcast %149 : vector<8x1xf32> to vector<8x8xf32>
    %151 = arith.subf %147, %150 : vector<8x8xf32>
    %152 = math.exp %151 : vector<8x8xf32>
    %cst_49 = arith.constant dense<0.000000e+00> : vector<8xf32>
    %153 = vector.multi_reduction <add>, %152, %cst_49 [1] : vector<8x8xf32> to vector<8xf32>
    %154 = vector.shape_cast %153 : vector<8xf32> to vector<8x1xf32>
    %155 = tpu.reciprocal %154 {approx = true} : vector<8x1xf32> -> vector<8x1xf32>
    %156 = vector.broadcast %155 : vector<8x1xf32> to vector<8x8xf32>
    %157 = arith.mulf %152, %156 : vector<8x8xf32>
    %158 = arith.mulf %157, %40 : vector<8x8xf32>
    %159 = arith.truncf %158 : vector<8x8xf32> to vector<8x8xbf16>
    %cst_50 = arith.constant dense<0.000000e+00> : vector<8x32xf32>
    %160 = tpu.matmul %159, %136, %cst_50 {dimension_numbers = #tpu.dot_dimension_numbers<[1], [0], [0], [1], [0, 0, 1, 1], [], []>} : vector<8x8xbf16>, vector<8x32xbf16>, vector<8x32xf32> -> vector<8x32xf32>
    %161 = tpu.concatenate %70, %100, %130, %160 in 1 : vector<8x32xf32>, vector<8x32xf32>, vector<8x32xf32>, vector<8x32xf32> -> vector<8x128xf32>
    %162 = arith.truncf %161 : vector<8x128xf32> to vector<8x128xbf16>
    %c0_51 = arith.constant 0 : index
    %c0_52 = arith.constant 0 : index
    %163 = vector.load %arg11[%c0_51, %c0_52] : memref<128x32xbf16, #tpu.memory_space<vmem>>, vector<128x32xbf16>
    %cst_53 = arith.constant dense<0.000000e+00> : vector<8x32xf32>
    %164 = tpu.matmul %162, %163, %cst_53 {dimension_numbers = #tpu.dot_dimension_numbers<[1], [0], [0], [1], [0, 0, 1, 1], [], []>} : vector<8x128xbf16>, vector<128x32xbf16>, vector<8x32xf32> -> vector<8x32xf32>
    %c0_54 = arith.constant 0 : index
    %c0_55 = arith.constant 0 : index
    %165 = vector.load %arg12[%c0_54, %c0_55] : memref<1x32xf32, #tpu.memory_space<vmem>>, vector<1x32xf32>
    %166 = vector.broadcast %165 : vector<1x32xf32> to vector<8x32xf32>
    %167 = arith.addf %164, %166 : vector<8x32xf32>
    %168 = arith.addf %167, %0 : vector<8x32xf32>
    %c0_56 = arith.constant 0 : index
    %c0_57 = arith.constant 0 : index
    %169 = vector.load %arg7[%c0_56, %c0_57] : memref<1x32xf32, #tpu.memory_space<vmem>>, vector<1x32xf32>
    %c0_58 = arith.constant 0 : index
    %c0_59 = arith.constant 0 : index
    %170 = vector.load %arg8[%c0_58, %c0_59] : memref<1x32xf32, #tpu.memory_space<vmem>>, vector<1x32xf32>
    %cst_60 = arith.constant dense<0.000000e+00> : vector<8xf32>
    %171 = vector.multi_reduction <add>, %168, %cst_60 [1] : vector<8x32xf32> to vector<8xf32>
    %172 = vector.shape_cast %171 : vector<8xf32> to vector<8x1xf32>
    %cst_61 = arith.constant 3.200000e+01 : f32
    %173 = vector.broadcast %cst_61 : f32 to vector<8x1xf32>
    %174 = arith.divf %172, %173 : vector<8x1xf32>
    %175 = vector.broadcast %174 : vector<8x1xf32> to vector<8x32xf32>
    %176 = arith.subf %168, %175 : vector<8x32xf32>
    %177 = arith.mulf %176, %176 : vector<8x32xf32>
    %cst_62 = arith.constant dense<0.000000e+00> : vector<8xf32>
    %178 = vector.multi_reduction <add>, %177, %cst_62 [1] : vector<8x32xf32> to vector<8xf32>
    %179 = vector.shape_cast %178 : vector<8xf32> to vector<8x1xf32>
    %cst_63 = arith.constant 3.200000e+01 : f32
    %180 = vector.broadcast %cst_63 : f32 to vector<8x1xf32>
    %181 = arith.divf %179, %180 : vector<8x1xf32>
    %182 = vector.broadcast %174 : vector<8x1xf32> to vector<8x32xf32>
    %183 = arith.subf %168, %182 : vector<8x32xf32>
    %cst_64 = arith.constant 9.99999974E-6 : f32
    %184 = vector.broadcast %cst_64 : f32 to vector<8x1xf32>
    %185 = arith.addf %181, %184 : vector<8x1xf32>
    %186 = math.rsqrt %185 : vector<8x1xf32>
    %187 = vector.broadcast %186 : vector<8x1xf32> to vector<8x32xf32>
    %188 = arith.mulf %183, %187 : vector<8x32xf32>
    %189 = vector.broadcast %169 : vector<1x32xf32> to vector<8x32xf32>
    %190 = arith.mulf %188, %189 : vector<8x32xf32>
    %191 = vector.broadcast %170 : vector<1x32xf32> to vector<8x32xf32>
    %192 = arith.addf %190, %191 : vector<8x32xf32>
    %193 = arith.truncf %192 : vector<8x32xf32> to vector<8x32xbf16>
    %c0_65 = arith.constant 0 : index
    %c0_66 = arith.constant 0 : index
    %194 = vector.load %arg13[%c0_65, %c0_66] : memref<32x32xbf16, #tpu.memory_space<vmem>>, vector<32x32xbf16>
    %cst_67 = arith.constant dense<0.000000e+00> : vector<8x32xf32>
    %195 = tpu.matmul %193, %194, %cst_67 {dimension_numbers = #tpu.dot_dimension_numbers<[1], [0], [0], [1], [0, 0, 1, 1], [], []>} : vector<8x32xbf16>, vector<32x32xbf16>, vector<8x32xf32> -> vector<8x32xf32>
    %c0_68 = arith.constant 0 : index
    %c0_69 = arith.constant 0 : index
    %196 = vector.load %arg14[%c0_68, %c0_69] : memref<1x32xf32, #tpu.memory_space<vmem>>, vector<1x32xf32>
    %197 = vector.broadcast %196 : vector<1x32xf32> to vector<8x32xf32>
    %198 = arith.addf %195, %197 : vector<8x32xf32>
    %199 = arith.addf %198, %168 : vector<8x32xf32>
    %c0_70 = arith.constant 0 : index
    %c0_71 = arith.constant 0 : index
    %200 = vector.load %arg15[%c0_70, %c0_71] : memref<8x32xf32, #tpu.memory_space<vmem>>, vector<8x32xf32>
    tpu.vector_store %arg15[%c0_70, %c0_71], %199 {strides = array<i32>} : memref<8x32xf32, #tpu.memory_space<vmem>>, vector<8x32xf32>,
    return
  }
  func.func @transform_0(%arg0: i32) -> (i32, i32) {
    %c0_i32 = arith.constant 0 : i32
    %c0_i32_0 = arith.constant 0 : i32
    %c0_i32_1 = arith.constant 0 : i32
    return %c0_i32, %c0_i32_0 : i32, i32
  }
  func.func @transform_1(%arg0: i32) -> (i32, i32, i32) {
    %c0_i32 = arith.constant 0 : i32
    %c0_i32_0 = arith.constant 0 : i32
    %c0_i32_1 = arith.constant 0 : i32
    %c0_i32_2 = arith.constant 0 : i32
    return %c0_i32, %c0_i32_0, %c0_i32_1 : i32, i32, i32
  }
  func.func @transform_2(%arg0: i32) -> (i32, i32) {
    %c0_i32 = arith.constant 0 : i32
    %c0_i32_0 = arith.constant 0 : i32
    %c0_i32_1 = arith.constant 0 : i32
    return %c0_i32, %c0_i32_0 : i32, i32
  }
  func.func @transform_3(%arg0: i32) -> (i32, i32) {
    %c0_i32 = arith.constant 0 : i32
    %c0_i32_0 = arith.constant 0 : i32
    %c0_i32_1 = arith.constant 0 : i32
    return %c0_i32, %c0_i32_0 : i32, i32
  }
  func.func @transform_4(%arg0: i32) -> (i32, i32) {
    %c0_i32 = arith.constant 0 : i32
    %c0_i32_0 = arith.constant 0 : i32
    %c0_i32_1 = arith.constant 0 : i32
    return %c0_i32, %c0_i32_0 : i32, i32
  }
  func.func @transform_5(%arg0: i32) -> (i32, i32) {
    %c0_i32 = arith.constant 0 : i32
    %c0_i32_0 = arith.constant 0 : i32
    %c0_i32_1 = arith.constant 0 : i32
    return %c0_i32, %c0_i32_0 : i32, i32
  }
  func.func @transform_6(%arg0: i32) -> (i32, i32) {
    %c0_i32 = arith.constant 0 : i32
    %c0_i32_0 = arith.constant 0 : i32
    %c0_i32_1 = arith.constant 0 : i32
    return %c0_i32, %c0_i32_0 : i32, i32
  }
  func.func @transform_7(%arg0: i32) -> (i32, i32) {
    %c0_i32 = arith.constant 0 : i32
    %c0_i32_0 = arith.constant 0 : i32
    %c0_i32_1 = arith.constant 0 : i32
    return %c0_i32, %c0_i32_0 : i32, i32
  }
  func.func @transform_8(%arg0: i32) -> (i32, i32) {
    %c0_i32 = arith.constant 0 : i32
    %c0_i32_0 = arith.constant 0 : i32
    %c0_i32_1 = arith.constant 0 : i32
    return %c0_i32, %c0_i32_0 : i32, i32
  }
  func.func @transform_9(%arg0: i32) -> (i32, i32) {
    %c0_i32 = arith.constant 0 : i32
    %c0_i32_0 = arith.constant 0 : i32
    %c0_i32_1 = arith.constant 0 : i32
    return %c0_i32, %c0_i32_0 : i32, i32
  }
  func.func @transform_10(%arg0: i32) -> (i32, i32) {
    %c0_i32 = arith.constant 0 : i32
    %c0_i32_0 = arith.constant 0 : i32
    %c0_i32_1 = arith.constant 0 : i32
    return %c0_i32, %c0_i32_0 : i32, i32
  }
  func.func @transform_11(%arg0: i32) -> (i32, i32) {
    %c0_i32 = arith.constant 0 : i32
    %c0_i32_0 = arith.constant 0 : i32
    %c0_i32_1 = arith.constant 0 : i32
    return %c0_i32, %c0_i32_0 : i32, i32
  }
  func.func @transform_12(%arg0: i32) -> (i32, i32) {
    %c0_i32 = arith.constant 0 : i32
    %c0_i32_0 = arith.constant 0 : i32
    %c0_i32_1 = arith.constant 0 : i32
    return %c0_i32, %c0_i32_0 : i32, i32
  }
  func.func @transform_13(%arg0: i32) -> (i32, i32) {
    %c0_i32 = arith.constant 0 : i32
    %c0_i32_0 = arith.constant 0 : i32
    %c0_i32_1 = arith.constant 0 : i32
    return %c0_i32, %c0_i32_0 : i32, i32
  }
  func.func @transform_14(%arg0: i32) -> (i32, i32) {
    %c0_i32 = arith.constant 0 : i32
    %c0_i32_0 = arith.constant 0 : i32
    %c0_i32_1 = arith.constant 0 : i32
    return %c0_i32, %c0_i32_0 : i32, i32
  }
}

</mosaic_0001>

<llo_original>
// kernel: tpu_custom_call.1
$region0: #{tpu_custom_call.1}
  #allocation0 [shape = 'u32[]', space=smem, size = 0x4, offset = 0x4, fixed_abs, tag = 'smem constant byte address 0x4 - core index']
  #allocation1 [shape = 'u32[144,128]{1,0:T(1,128)}', space=vmem, size = 0x12000, scoped, tag = 'internal scratch']
  %s0 = inlined_call_operand.vmem [shape: f32[8,32], index: 0, kind: input, shape index: {}]
  %s1 = inlined_call_operand.vmem [shape: bf16[4,8,8], index: 1, kind: input, shape index: {}]
  %s2 = inlined_call_operand.vmem [shape: s32[1,8], index: 2, kind: input, shape index: {}]
  %s3 = inlined_call_operand.vmem [shape: s32[8,1], index: 3, kind: input, shape index: {}]
  %s4 = inlined_call_operand.vmem [shape: f32[1,32], index: 4, kind: input, shape index: {}]
  %s5 = inlined_call_operand.vmem [shape: f32[1,32], index: 5, kind: input, shape index: {}]
  %s6 = inlined_call_operand.vmem [shape: f32[1,32], index: 6, kind: input, shape index: {}]
  %s7 = inlined_call_operand.vmem [shape: f32[1,32], index: 7, kind: input, shape index: {}]
  %s8 = inlined_call_operand.vmem [shape: bf16[32,384], index: 8, kind: input, shape index: {}]
  %s9 = inlined_call_operand.vmem [shape: f32[1,384], index: 9, kind: input, shape index: {}]
  %s10 = inlined_call_operand.vmem [shape: bf16[128,32], index: 10, kind: input, shape index: {}]
  %s11 = inlined_call_operand.vmem [shape: f32[1,32], index: 11, kind: input, shape index: {}]
  %s12 = inlined_call_operand.vmem [shape: bf16[32,32], index: 12, kind: input, shape index: {}]
  %s13 = inlined_call_operand.vmem [shape: f32[1,32], index: 13, kind: input, shape index: {}]
  %s14 = inlined_call_operand.hbm [shape: f32[8,32], index: 14, kind: output, shape index: {}]
  %s15 = sld [smem:[#allocation0]]
  $region66: #{tpu_custom_call.1} parent=0
    _
  %s17 = ssub.s32 1, %s15
  %s18 = scalar_select 0, %s17, %s15
  $region1: #{tpu_custom_call.1} parent=0
    #allocation2 [shape = 'u8[4096]{0}', space=vmem, size = 0x1000, scoped, tag = 'output window, operand 0, single buffered']
    #allocation3 [shape = 's32[1]{0}', space=sflag, size = 0x4, scoped, tag = 'scoped memory for tpu_custom_call.1']
    %19 = vsyncpa [#allocation3], 0
    // Predicated region
    $region2: #{tpu_custom_call.1} parent=1 // pred_check
      _
    $region3: #{tpu_custom_call.1} parent=1 // pred_check_branch
      %21 = sbr.rel (0) target = $region5
    $region4: #{tpu_custom_call.1} parent=1 // pred_region
      _
    $region5: #{tpu_custom_call.1} parent=1 // pred_fallthru
      _
    // Predicated region
    $region6: #{tpu_custom_call.1} parent=1 // pred_check
      _
    $region7: #{tpu_custom_call.1} parent=1 // pred_check_branch
      %23 = sbr.rel (0) target = $region9
    $region8: #{tpu_custom_call.1} parent=1 // pred_region
      _
    $region9: #{tpu_custom_call.1} parent=1 // pred_fallthru
      _
    // Predicated region
    $region10: #{tpu_custom_call.1} parent=1 // pred_check
      _
    $region11: #{tpu_custom_call.1} parent=1 // pred_check_branch
      %25 = sbr.rel (0) target = $region13
    $region12: #{tpu_custom_call.1} parent=1 // pred_region
      _
    $region13: #{tpu_custom_call.1} parent=1 // pred_fallthru
      _
    // Predicated region
    $region14: #{tpu_custom_call.1} parent=1 // pred_check
      _
    $region15: #{tpu_custom_call.1} parent=1 // pred_check_branch
      %27 = sbr.rel (0) target = $region17
    $region16: #{tpu_custom_call.1} parent=1 // pred_region
      _
    $region17: #{tpu_custom_call.1} parent=1 // pred_fallthru
      _
    // Predicated region
    $region18: #{tpu_custom_call.1} parent=1 // pred_check
      _
    $region19: #{tpu_custom_call.1} parent=1 // pred_check_branch
      %29 = sbr.rel (0) target = $region21
    $region20: #{tpu_custom_call.1} parent=1 // pred_region
      _
    $region21: #{tpu_custom_call.1} parent=1 // pred_fallthru
      _
    // Predicated region
    $region22: #{tpu_custom_call.1} parent=1 // pred_check
      _
    $region23: #{tpu_custom_call.1} parent=1 // pred_check_branch
      %31 = sbr.rel (0) target = $region25
    $region24: #{tpu_custom_call.1} parent=1 // pred_region
      _
    $region25: #{tpu_custom_call.1} parent=1 // pred_fallthru
      _
    // Predicated region
    $region26: #{tpu_custom_call.1} parent=1 // pred_check
      _
    $region27: #{tpu_custom_call.1} parent=1 // pred_check_branch
      %33 = sbr.rel (0) target = $region29
    $region28: #{tpu_custom_call.1} parent=1 // pred_region
      _
    $region29: #{tpu_custom_call.1} parent=1 // pred_fallthru
      _
    // Predicated region
    $region30: #{tpu_custom_call.1} parent=1 // pred_check
      _
    $region31: #{tpu_custom_call.1} parent=1 // pred_check_branch
      %35 = sbr.rel (0) target = $region33
    $region32: #{tpu_custom_call.1} parent=1 // pred_region
      _
    $region33: #{tpu_custom_call.1} parent=1 // pred_fallthru
      _
    // Predicated region
    $region34: #{tpu_custom_call.1} parent=1 // pred_check
      _
    $region35: #{tpu_custom_call.1} parent=1 // pred_check_branch
      %37 = sbr.rel (0) target = $region37
    $region36: #{tpu_custom_call.1} parent=1 // pred_region
      _
    $region37: #{tpu_custom_call.1} parent=1 // pred_fallthru
      _
    // Predicated region
    $region38: #{tpu_custom_call.1} parent=1 // pred_check
      _
    $region39: #{tpu_custom_call.1} parent=1 // pred_check_branch
      %39 = sbr.rel (0) target = $region41
    $region40: #{tpu_custom_call.1} parent=1 // pred_region
      _
    $region41: #{tpu_custom_call.1} parent=1 // pred_fallthru
      _
    // Predicated region
    $region42: #{tpu_custom_call.1} parent=1 // pred_check
      _
    $region43: #{tpu_custom_call.1} parent=1 // pred_check_branch
      %41 = sbr.rel (0) target = $region45
    $region44: #{tpu_custom_call.1} parent=1 // pred_region
      _
    $region45: #{tpu_custom_call.1} parent=1 // pred_fallthru
      _
    // Predicated region
    $region46: #{tpu_custom_call.1} parent=1 // pred_check
      _
    $region47: #{tpu_custom_call.1} parent=1 // pred_check_branch
      %43 = sbr.rel (0) target = $region49
    $region48: #{tpu_custom_call.1} parent=1 // pred_region
      _
    $region49: #{tpu_custom_call.1} parent=1 // pred_fallthru
      _
    // Predicated region
    $region50: #{tpu_custom_call.1} parent=1 // pred_check
      _
    $region51: #{tpu_custom_call.1} parent=1 // pred_check_branch
      %45 = sbr.rel (0) target = $region53
    $region52: #{tpu_custom_call.1} parent=1 // pred_region
      _
    $region53: #{tpu_custom_call.1} parent=1 // pred_fallthru
      _
    // Predicated region
    $region54: #{tpu_custom_call.1} parent=1 // pred_check
      _
    $region55: #{tpu_custom_call.1} parent=1 // pred_check_branch
      %47 = sbr.rel (0) target = $region57
    $region56: #{tpu_custom_call.1} parent=1 // pred_region
      _
    $region57: #{tpu_custom_call.1} parent=1 // pred_fallthru
      _
    %v49 = vld [vmem:[%s0] sm:$0xff]
    %v50 = vld [vmem:[%s4] sm:$0x1]
    %v51 = vld [vmem:[%s5] sm:$0x1]
    %vm52 = vcmask 261120
    %v53 = vsel %vm52, %v49, 0.0
    %54 = vadd.xlane.f32.xlu0 %v53
    %v55 = vpop.xlane.xlu0 %54
    %v56 = vrcp.pop 32.0
    %v57 = vmul.f32 %v55, %v56
    %v58 = vsub.f32 %v49, %v57
    %v59 = vmul.f32 %v58, %v58
    %v60 = vsel %vm52, %v59, 0.0
    %61 = vadd.xlane.f32.xlu0 %v60
    %v62 = vpop.xlane.xlu0 %61
    %v63 = vmul.f32 %v62, %v56
    %v64 = vadd.f32 %v63, 1e-05
    %v65 = vrsqrt.pop %v64
    %v66 = vmul.f32 %v58, %v65
    %v68 = vlaneseq
    %v69 = vshrl.u32 %v68, 7
    %v70 = vsub.s32 0, %v69
    %v71 = vrot.slane %v50, %v70
    %v73 = vmul.f32 %v66, %v71
    %v75 = vlaneseq
    %v76 = vshrl.u32 %v75, 7
    %v77 = vsub.s32 0, %v76
    %v78 = vrot.slane %v51, %v77
    %v80 = vadd.f32 %v73, %v78
    %v81 = vpack.c.bf16 %v80, %v80
    %v82 = vld [vmem:[%s8] sm:$0xff]
    %v83 = vld [vmem:[%s8 + $0x8] sm:$0xf]
    %v84 = vld [vmem:[%s8 + $0xc] sm:$0xff]
    %v85 = vld [vmem:[%s8 + $0x14] sm:$0xf]
    %v86 = vld [vmem:[%s8 + $0x18] sm:$0xff]
    %v87 = vld [vmem:[%s8 + $0x20] sm:$0xf]
    %v88 = vld [vmem:[%s8 + $0x24] sm:$0xff]
    %v89 = vld [vmem:[%s8 + $0x2c] sm:$0xf]
    %v90 = vld [vmem:[%s9] sm:$0x7]
    %v92 = vlaneseq
    %v93 = vshrl.u32 %v92, 7
    %v94 = vsub.s32 0, %v93
    %v95 = vrot.slane %v90, %v94
    %v96 = vlaneseq
    %v97 = vshrl.u32 %v96, 7
    %v98 = vsub.s32 1, %v97
    %v99 = vrot.slane %v90, %v98
    %v100 = vlaneseq
    %v101 = vshrl.u32 %v100, 7
    %v102 = vsub.s32 2, %v101
    %v103 = vrot.slane %v90, %v102
    %v115 = vunpack.c.l.b16 %v82
    %v116 = vunpack.c.h.b16 %v82
    %v117 = vunpack.c.l.b16 %v83
    %v118 = vunpack.c.l.b16 %v84
    %v119 = vunpack.c.h.b16 %v84
    %v120 = vunpack.c.l.b16 %v85
    %v121 = vunpack.c.l.b16 %v86
    %v122 = vunpack.c.h.b16 %v86
    %v123 = vunpack.c.l.b16 %v87
    %v124 = vunpack.c.l.b16 %v88
    %v125 = vunpack.c.h.b16 %v88
    %v126 = vunpack.c.l.b16 %v89
    %v127 = vpack.c.b16 %v118, %v115
    %v128 = vpack.c.b16 %v119, %v116
    %v129 = vpack.c.b16 %v120, %v117
    %v130 = vpack.c.b16 %v124, %v121
    %v131 = vpack.c.b16 %v125, %v122
    %v132 = vpack.c.b16 %v126, %v123
    %v140 = vsel %vm52, %v81, 0
    %142 = vmatprep.subr.bf16.mxu0 %v128
    %143 = vmatpush1.bf16.msra.mxu0 %v127
    %144 = vmatprep.subr.bf16.mxu0 %v131
    %145 = vmatpush1.bf16.msra.mxu0 %v130
    %146 = vmatprep.subr.bf16.mxu0 0
    %147 = vmatpush1.bf16.msra.mxu0 0
    %148 = vmatprep.subr.bf16.mxu0 0
    %149 = vmatpush1.bf16.msra.mxu0 0
    %150 = vmatprep.subr.bf16.mxu0 0
    %151 = vmatpush1.bf16.msra.mxu0 0
    %152 = vmatprep.subr.bf16.mxu0 0
    %153 = vmatpush1.bf16.msra.mxu0 0
    %154 = vmatprep.subr.bf16.mxu0 0
    %155 = vmatpush1.bf16.msra.mxu0 0
    %156 = vmatprep.subr.bf16.mxu0 0
    %157 = vmatpush1.bf16.msra.mxu0 0
    %158 = vmatprep.subr.bf16.mxu0 0
    %159 = vmatpush1.bf16.msra.mxu0 0
    %160 = vmatprep.subr.bf16.mxu0 0
    %161 = vmatpush1.bf16.msra.mxu0 0
    %162 = vmatprep.subr.bf16.mxu0 0
    %163 = vmatpush1.bf16.msra.mxu0 0
    %164 = vmatprep.subr.bf16.mxu0 0
    %165 = vmatpush1.bf16.msra.mxu0 0
    %166 = vmatprep.subr.bf16.mxu0 0
    %167 = vmatpush1.bf16.msra.mxu0 0
    %168 = vmatprep.subr.bf16.mxu0 0
    %169 = vmatpush1.bf16.msra.mxu0 0
    %170 = vmatprep.subr.bf16.mxu0 0
    %171 = vmatpush1.bf16.msra.mxu0 0
    %172 = vmatprep.subr.bf16.mxu0 0
    %173 = vmatpush1.bf16.msra.mxu0 0
    %174 = vmatprep.mubr.bf16.mxu0 0
    %175 = vmatmul.mubr.bf16.gmra.mrb[0].mxu0 %v140
    %v176 = vpop.f32.mrb[0].mxu0
    %v177 = vadd.f32 %v95, %v176
    %v178 = vpop.f32.mrb[0].mxu0
    %v179 = vadd.f32 %v99, %v178
    %v180 = vpop.f32.mrb[0].mxu0
    %v181 = vpop.f32.mrb[0].mxu0
    %182 = vdwg.mxu0
    %183 = vmatprep.subr.bf16.mxu0 0
    %184 = vmatpush1.bf16.msra.mxu0 %v129
    %185 = vmatprep.subr.bf16.mxu0 0
    %186 = vmatpush1.bf16.msra.mxu0 %v132
    %187 = vmatprep.subr.bf16.mxu0 0
    %188 = vmatpush1.bf16.msra.mxu0 0
    %189 = vmatprep.subr.bf16.mxu0 0
    %190 = vmatpush1.bf16.msra.mxu0 0
    %191 = vmatprep.subr.bf16.mxu0 0
    %192 = vmatpush1.bf16.msra.mxu0 0
    %193 = vmatprep.subr.bf16.mxu0 0
    %194 = vmatpush1.bf16.msra.mxu0 0
    %195 = vmatprep.subr.bf16.mxu0 0
    %196 = vmatpush1.bf16.msra.mxu0 0
    %197 = vmatprep.subr.bf16.mxu0 0
    %198 = vmatpush1.bf16.msra.mxu0 0
    %199 = vmatprep.subr.bf16.mxu0 0
    %200 = vmatpush1.bf16.msra.mxu0 0
    %201 = vmatprep.subr.bf16.mxu0 0
    %202 = vmatpush1.bf16.msra.mxu0 0
    %203 = vmatprep.subr.bf16.mxu0 0
    %204 = vmatpush1.bf16.msra.mxu0 0
    %205 = vmatprep.subr.bf16.mxu0 0
    %206 = vmatpush1.bf16.msra.mxu0 0
    %207 = vmatprep.subr.bf16.mxu0 0
    %208 = vmatpush1.bf16.msra.mxu0 0
    %209 = vmatprep.subr.bf16.mxu0 0
    %210 = vmatpush1.bf16.msra.mxu0 0
    %211 = vmatprep.subr.bf16.mxu0 0
    %212 = vmatpush1.bf16.msra.mxu0 0
    %213 = vmatprep.subr.bf16.mxu0 0
    %214 = vmatpush1.bf16.msra.mxu0 0
    %215 = vmatprep.mubr.bf16.mxu0 0
    %216 = vmatmul.mubr.bf16.gmra.mrb[0].mxu0 %v140
    %v217 = vpop.f32.mrb[0].mxu0
    %v218 = vadd.f32 %v103, %v217
    %v219 = vpop.f32.mrb[0].mxu0
    %v220 = vpop.f32.mrb[0].mxu0
    %v221 = vpop.f32.mrb[0].mxu0
    %222 = vdwg.mxu0
    %v223 = vld [vmem:[%s3] sm:$0xff]
    %v224 = vld [vmem:[%s2] sm:$0x1]
    %225 = vset.pattern.permute.xlu0 0
    %226 = vperm.xlu0 %225, %v223
    %v227 = vpop.permute.xlu0 %226
    %v228 = vlaneseq
    %v229 = vshrl.u32 %v228, 7
    %v230 = vsub.s32 0, %v229
    %v231 = vrot.slane %v224, %v230
    %vm232 = vcmp.eq.s32.totalorder %v227, %v231
    %v233 = vsel %vm232, 1, 0
    %v234 = vcvt.s32.f32 %v233
    %v235 = vpack.c.bf16 %v177, %v177
    %v236 = vpack.c.bf16 %v179, %v179
    %v237 = vpack.c.bf16 %v218, %v218
    %v239 = vsel %vm52, %v235, 0
    %v242 = vsel %vm52, %v236, 0
    %244 = vmatprep.subr.bf16.mxu0 0
    %245 = vmatpush1.bf16.xpose.msra.mxu0 %v242
    %246 = vmatprep.subr.bf16.mxu0 0
    %247 = vmatpush1.bf16.xpose.msra.mxu0 0
    %248 = vmatprep.subr.bf16.mxu0 0
    %249 = vmatpush1.bf16.xpose.msra.mxu0 0
    %250 = vmatprep.subr.bf16.mxu0 0
    %251 = vmatpush1.bf16.xpose.msra.mxu0 0
    %252 = vmatprep.subr.bf16.mxu0 0
    %253 = vmatpush1.bf16.xpose.msra.mxu0 0
    %254 = vmatprep.subr.bf16.mxu0 0
    %255 = vmatpush1.bf16.xpose.msra.mxu0 0
    %256 = vmatprep.subr.bf16.mxu0 0
    %257 = vmatpush1.bf16.xpose.msra.mxu0 0
    %258 = vmatprep.subr.bf16.mxu0 0
    %259 = vmatpush1.bf16.xpose.msra.mxu0 0
    %260 = vmatprep.subr.bf16.mxu0 0
    %261 = vmatpush1.bf16.xpose.msra.mxu0 0
    %262 = vmatprep.subr.bf16.mxu0 0
    %263 = vmatpush1.bf16.xpose.msra.mxu0 0
    %264 = vmatprep.subr.bf16.mxu0 0
    %265 = vmatpush1.bf16.xpose.msra.mxu0 0
    %266 = vmatprep.subr.bf16.mxu0 0
    %267 = vmatpush1.bf16.xpose.msra.mxu0 0
    %268 = vmatprep.subr.bf16.mxu0 0
    %269 = vmatpush1.bf16.xpose.msra.mxu0 0
    %270 = vmatprep.subr.bf16.mxu0 0
    %271 = vmatpush1.bf16.xpose.msra.mxu0 0
    %272 = vmatprep.subr.bf16.mxu0 0
    %273 = vmatpush1.bf16.xpose.msra.mxu0 0
    %274 = vmatprep.subr.bf16.mxu0 0
    %275 = vmatpush1.bf16.xpose.msra.mxu0 0
    %276 = vmatprep.mubr.bf16.mxu0 0
    %277 = vmatmul.mubr.bf16.gmra.mrb[0].mxu0 %v239
    %v278 = vpop.f32.mrb[0].mxu0
    %v279 = vadd.f32 0.0, %v278
    %v280 = vpop.f32.mrb[0].mxu0
    %v281 = vpop.f32.mrb[0].mxu0
    %v282 = vpop.f32.mrb[0].mxu0
    %283 = vdwg.mxu0
    %v284 = vmul.f32 %v279, 0.17677669
    %v285 = vmul.f32 %v284, %v234
    %v286 = vld [vmem:[%s1] sm:$0xf]
    %v287 = vunpack.c.l.bf16 %v286
    %v288 = vadd.f32 %v285, %v287
    %v289 = vmul.f32 %v288, -1000000.0
    %v290 = vsel %vm232, %v288, %v289
    %vm291 = vcmask 64512
    %v292 = vsel %vm291, %v290, -inf
    %293 = vmax.xlane.f32.xlu0 %v292
    %v294 = vpop.xlane.xlu0 %293
    %v295 = vsub.f32 %v290, %v294
    %v296 = vmul.f32 %v295, 1.442695
    %v297 = vpow.pop %v296
    %v298 = vsel %vm291, %v297, 0.0
    %299 = vadd.xlane.f32.xlu0 %v298
    %v300 = vpop.xlane.xlu0 %299
    %v301 = vrcp.pop %v300
    %v302 = vmul.f32 %v297, %v301
    %v303 = vmul.f32 %v302, %v234
    %v304 = vpack.c.bf16 %v303, %v303
    %v306 = vsel %vm291, %v304, 0
    %vm308 = vcmask 1043456
    %v310 = vsel %vm308, %v237, 0
    %312 = vmatprep.subr.bf16.mxu0 0
    %313 = vmatpush1.bf16.msra.mxu0 %v310
    %314 = vmatprep.subr.bf16.mxu0 0
    %315 = vmatpush1.bf16.msra.mxu0 0
    %316 = vmatprep.subr.bf16.mxu0 0
    %317 = vmatpush1.bf16.msra.mxu0 0
    %318 = vmatprep.subr.bf16.mxu0 0
    %319 = vmatpush1.bf16.msra.mxu0 0
    %320 = vmatprep.subr.bf16.mxu0 0
    %321 = vmatpush1.bf16.msra.mxu0 0
    %322 = vmatprep.subr.bf16.mxu0 0
    %323 = vmatpush1.bf16.msra.mxu0 0
    %324 = vmatprep.subr.bf16.mxu0 0
    %325 = vmatpush1.bf16.msra.mxu0 0
    %326 = vmatprep.subr.bf16.mxu0 0
    %327 = vmatpush1.bf16.msra.mxu0 0
    %328 = vmatprep.subr.bf16.mxu0 0
    %329 = vmatpush1.bf16.msra.mxu0 0
    %330 = vmatprep.subr.bf16.mxu0 0
    %331 = vmatpush1.bf16.msra.mxu0 0
    %332 = vmatprep.subr.bf16.mxu0 0
    %333 = vmatpush1.bf16.msra.mxu0 0
    %334 = vmatprep.subr.bf16.mxu0 0
    %335 = vmatpush1.bf16.msra.mxu0 0
    %336 = vmatprep.subr.bf16.mxu0 0
    %337 = vmatpush1.bf16.msra.mxu0 0
    %338 = vmatprep.subr.bf16.mxu0 0
    %339 = vmatpush1.bf16.msra.mxu0 0
    %340 = vmatprep.subr.bf16.mxu0 0
    %341 = vmatpush1.bf16.msra.mxu0 0
    %342 = vmatprep.subr.bf16.mxu0 0
    %343 = vmatpush1.bf16.msra.mxu0 0
    %344 = vmatprep.mubr.bf16.mxu0 0
    %345 = vmatmul.mubr.bf16.gmra.mrb[0].mxu0 %v306
    %v346 = vpop.f32.mrb[0].mxu0
    %v347 = vadd.f32 0.0, %v346
    %v348 = vpop.f32.mrb[0].mxu0
    %v349 = vpop.f32.mrb[0].mxu0
    %v350 = vpop.f32.mrb[0].mxu0
    %351 = vdwg.mxu0
    %353 = vrot.lane.b32.xlu0 %v235, 96
    %v354 = vpop.permute.xlu0 %353
    %356 = vrot.lane.b32.xlu0 %v236, 96
    %v357 = vpop.permute.xlu0 %356
    %v359 = vsel %vm52, %v354, 0
    %v362 = vsel %vm52, %v357, 0
    %364 = vmatprep.subr.bf16.mxu0 0
    %365 = vmatpush1.bf16.xpose.msra.mxu0 %v362
    %366 = vmatprep.subr.bf16.mxu0 0
    %367 = vmatpush1.bf16.xpose.msra.mxu0 0
    %368 = vmatprep.subr.bf16.mxu0 0
    %369 = vmatpush1.bf16.xpose.msra.mxu0 0
    %370 = vmatprep.subr.bf16.mxu0 0
    %371 = vmatpush1.bf16.xpose.msra.mxu0 0
    %372 = vmatprep.subr.bf16.mxu0 0
    %373 = vmatpush1.bf16.xpose.msra.mxu0 0
    %374 = vmatprep.subr.bf16.mxu0 0
    %375 = vmatpush1.bf16.xpose.msra.mxu0 0
    %376 = vmatprep.subr.bf16.mxu0 0
    %377 = vmatpush1.bf16.xpose.msra.mxu0 0
    %378 = vmatprep.subr.bf16.mxu0 0
    %379 = vmatpush1.bf16.xpose.msra.mxu0 0
    %380 = vmatprep.subr.bf16.mxu0 0
    %381 = vmatpush1.bf16.xpose.msra.mxu0 0
    %382 = vmatprep.subr.bf16.mxu0 0
    %383 = vmatpush1.bf16.xpose.msra.mxu0 0
    %384 = vmatprep.subr.bf16.mxu0 0
    %385 = vmatpush1.bf16.xpose.msra.mxu0 0
    %386 = vmatprep.subr.bf16.mxu0 0
    %387 = vmatpush1.bf16.xpose.msra.mxu0 0
    %388 = vmatprep.subr.bf16.mxu0 0
    %389 = vmatpush1.bf16.xpose.msra.mxu0 0
    %390 = vmatprep.subr.bf16.mxu0 0
    %391 = vmatpush1.bf16.xpose.msra.mxu0 0
    %392 = vmatprep.subr.bf16.mxu0 0
    %393 = vmatpush1.bf16.xpose.msra.mxu0 0
    %394 = vmatprep.subr.bf16.mxu0 0
    %395 = vmatpush1.bf16.xpose.msra.mxu0 0
    %396 = vmatprep.mubr.bf16.mxu0 0
    %397 = vmatmul.mubr.bf16.gmra.mrb[0].mxu0 %v359
    %v398 = vpop.f32.mrb[0].mxu0
    %v399 = vadd.f32 0.0, %v398
    %v400 = vpop.f32.mrb[0].mxu0
    %v401 = vpop.f32.mrb[0].mxu0
    %v402 = vpop.f32.mrb[0].mxu0
    %403 = vdwg.mxu0
    %v404 = vmul.f32 %v399, 0.17677669
    %v405 = vmul.f32 %v404, %v234
    %s406 = scalar_lea.vmem %s1, 4
    %v407 = vld [vmem:[%s406] sm:$0xf]
    %v408 = vunpack.c.l.bf16 %v407
    %v409 = vadd.f32 %v405, %v408
    %v410 = vmul.f32 %v409, -1000000.0
    %v411 = vsel %vm232, %v409, %v410
    %v412 = vsel %vm291, %v411, -inf
    %413 = vmax.xlane.f32.xlu0 %v412
    %v414 = vpop.xlane.xlu0 %413
    %v415 = vsub.f32 %v411, %v414
    %v416 = vmul.f32 %v415, 1.442695
    %v417 = vpow.pop %v416
    %v418 = vsel %vm291, %v417, 0.0
    %419 = vadd.xlane.f32.xlu0 %v418
    %v420 = vpop.xlane.xlu0 %419
    %v421 = vrcp.pop %v420
    %v422 = vmul.f32 %v417, %v421
    %v423 = vmul.f32 %v422, %v234
    %v424 = vpack.c.bf16 %v423, %v423
    %426 = vrot.lane.b32.xlu0 %v237, 96
    %v427 = vpop.permute.xlu0 %426
    %v429 = vsel %vm291, %v424, 0
    %v432 = vsel %vm308, %v427, 0
    %434 = vmatprep.subr.bf16.mxu0 0
    %435 = vmatpush1.bf16.msra.mxu0 %v432
    %436 = vmatprep.subr.bf16.mxu0 0
    %437 = vmatpush1.bf16.msra.mxu0 0
    %438 = vmatprep.subr.bf16.mxu0 0
    %439 = vmatpush1.bf16.msra.mxu0 0
    %440 = vmatprep.subr.bf16.mxu0 0
    %441 = vmatpush1.bf16.msra.mxu0 0
    %442 = vmatprep.subr.bf16.mxu0 0
    %443 = vmatpush1.bf16.msra.mxu0 0
    %444 = vmatprep.subr.bf16.mxu0 0
    %445 = vmatpush1.bf16.msra.mxu0 0
    %446 = vmatprep.subr.bf16.mxu0 0
    %447 = vmatpush1.bf16.msra.mxu0 0
    %448 = vmatprep.subr.bf16.mxu0 0
    %449 = vmatpush1.bf16.msra.mxu0 0
    %450 = vmatprep.subr.bf16.mxu0 0
    %451 = vmatpush1.bf16.msra.mxu0 0
    %452 = vmatprep.subr.bf16.mxu0 0
    %453 = vmatpush1.bf16.msra.mxu0 0
    %454 = vmatprep.subr.bf16.mxu0 0
    %455 = vmatpush1.bf16.msra.mxu0 0
    %456 = vmatprep.subr.bf16.mxu0 0
    %457 = vmatpush1.bf16.msra.mxu0 0
    %458 = vmatprep.subr.bf16.mxu0 0
    %459 = vmatpush1.bf16.msra.mxu0 0
    %460 = vmatprep.subr.bf16.mxu0 0
    %461 = vmatpush1.bf16.msra.mxu0 0
    %462 = vmatprep.subr.bf16.mxu0 0
    %463 = vmatpush1.bf16.msra.mxu0 0
    %464 = vmatprep.subr.bf16.mxu0 0
    %465 = vmatpush1.bf16.msra.mxu0 0
    %466 = vmatprep.mubr.bf16.mxu0 0
    %467 = vmatmul.mubr.bf16.gmra.mrb[0].mxu0 %v429
    %v468 = vpop.f32.mrb[0].mxu0
    %v469 = vadd.f32 0.0, %v468
    %v470 = vpop.f32.mrb[0].mxu0
    %v471 = vpop.f32.mrb[0].mxu0
    %v472 = vpop.f32.mrb[0].mxu0
    %473 = vdwg.mxu0
    %474 = vrot.lane.b32.xlu0 %v235, 64
    %v475 = vpop.permute.xlu0 %474
    %476 = vrot.lane.b32.xlu0 %v236, 64
    %v477 = vpop.permute.xlu0 %476
    %v479 = vsel %vm52, %v475, 0
    %v482 = vsel %vm52, %v477, 0
    %484 = vmatprep.subr.bf16.mxu0 0
    %485 = vmatpush1.bf16.xpose.msra.mxu0 %v482
    %486 = vmatprep.subr.bf16.mxu0 0
    %487 = vmatpush1.bf16.xpose.msra.mxu0 0
    %488 = vmatprep.subr.bf16.mxu0 0
    %489 = vmatpush1.bf16.xpose.msra.mxu0 0
    %490 = vmatprep.subr.bf16.mxu0 0
    %491 = vmatpush1.bf16.xpose.msra.mxu0 0
    %492 = vmatprep.subr.bf16.mxu0 0
    %493 = vmatpush1.bf16.xpose.msra.mxu0 0
    %494 = vmatprep.subr.bf16.mxu0 0
    %495 = vmatpush1.bf16.xpose.msra.mxu0 0
    %496 = vmatprep.subr.bf16.mxu0 0
    %497 = vmatpush1.bf16.xpose.msra.mxu0 0
    %498 = vmatprep.subr.bf16.mxu0 0
    %499 = vmatpush1.bf16.xpose.msra.mxu0 0
    %500 = vmatprep.subr.bf16.mxu0 0
    %501 = vmatpush1.bf16.xpose.msra.mxu0 0
    %502 = vmatprep.subr.bf16.mxu0 0
    %503 = vmatpush1.bf16.xpose.msra.mxu0 0
    %504 = vmatprep.subr.bf16.mxu0 0
    %505 = vmatpush1.bf16.xpose.msra.mxu0 0
    %506 = vmatprep.subr.bf16.mxu0 0
    %507 = vmatpush1.bf16.xpose.msra.mxu0 0
    %508 = vmatprep.subr.bf16.mxu0 0
    %509 = vmatpush1.bf16.xpose.msra.mxu0 0
    %510 = vmatprep.subr.bf16.mxu0 0
    %511 = vmatpush1.bf16.xpose.msra.mxu0 0
    %512 = vmatprep.subr.bf16.mxu0 0
    %513 = vmatpush1.bf16.xpose.msra.mxu0 0
    %514 = vmatprep.subr.bf16.mxu0 0
    %515 = vmatpush1.bf16.xpose.msra.mxu0 0
    %516 = vmatprep.mubr.bf16.mxu0 0
    %517 = vmatmul.mubr.bf16.gmra.mrb[0].mxu0 %v479
    %v518 = vpop.f32.mrb[0].mxu0
    %v519 = vadd.f32 0.0, %v518
    %v520 = vpop.f32.mrb[0].mxu0
    %v521 = vpop.f32.mrb[0].mxu0
    %v522 = vpop.f32.mrb[0].mxu0
    %523 = vdwg.mxu0
    %v524 = vmul.f32 %v519, 0.17677669
    %v525 = vmul.f32 %v524, %v234
    %s526 = scalar_lea.vmem %s1, 8
    %v527 = vld [vmem:[%s526] sm:$0xf]
    %v528 = vunpack.c.l.bf16 %v527
    %v529 = vadd.f32 %v525, %v528
    %v530 = vmul.f32 %v529, -1000000.0
    %v531 = vsel %vm232, %v529, %v530
    %v532 = vsel %vm291, %v531, -inf
    %533 = vmax.xlane.f32.xlu0 %v532
    %v534 = vpop.xlane.xlu0 %533
    %v535 = vsub.f32 %v531, %v534
    %v536 = vmul.f32 %v535, 1.442695
    %v537 = vpow.pop %v536
    %v538 = vsel %vm291, %v537, 0.0
    %539 = vadd.xlane.f32.xlu0 %v538
    %v540 = vpop.xlane.xlu0 %539
    %v541 = vrcp.pop %v540
    %v542 = vmul.f32 %v537, %v541
    %v543 = vmul.f32 %v542, %v234
    %v544 = vpack.c.bf16 %v543, %v543
    %545 = vrot.lane.b32.xlu0 %v237, 64
    %v546 = vpop.permute.xlu0 %545
    %v548 = vsel %vm291, %v544, 0
    %v551 = vsel %vm308, %v546, 0
    %553 = vmatprep.subr.bf16.mxu0 0
    %554 = vmatpush1.bf16.msra.mxu0 %v551
    %555 = vmatprep.subr.bf16.mxu0 0
    %556 = vmatpush1.bf16.msra.mxu0 0
    %557 = vmatprep.subr.bf16.mxu0 0
    %558 = vmatpush1.bf16.msra.mxu0 0
    %559 = vmatprep.subr.bf16.mxu0 0
    %560 = vmatpush1.bf16.msra.mxu0 0
    %561 = vmatprep.subr.bf16.mxu0 0
    %562 = vmatpush1.bf16.msra.mxu0 0
    %563 = vmatprep.subr.bf16.mxu0 0
    %564 = vmatpush1.bf16.msra.mxu0 0
    %565 = vmatprep.subr.bf16.mxu0 0
    %566 = vmatpush1.bf16.msra.mxu0 0
    %567 = vmatprep.subr.bf16.mxu0 0
    %568 = vmatpush1.bf16.msra.mxu0 0
    %569 = vmatprep.subr.bf16.mxu0 0
    %570 = vmatpush1.bf16.msra.mxu0 0
    %571 = vmatprep.subr.bf16.mxu0 0
    %572 = vmatpush1.bf16.msra.mxu0 0
    %573 = vmatprep.subr.bf16.mxu0 0
    %574 = vmatpush1.bf16.msra.mxu0 0
    %575 = vmatprep.subr.bf16.mxu0 0
    %576 = vmatpush1.bf16.msra.mxu0 0
    %577 = vmatprep.subr.bf16.mxu0 0
    %578 = vmatpush1.bf16.msra.mxu0 0
    %579 = vmatprep.subr.bf16.mxu0 0
    %580 = vmatpush1.bf16.msra.mxu0 0
    %581 = vmatprep.subr.bf16.mxu0 0
    %582 = vmatpush1.bf16.msra.mxu0 0
    %583 = vmatprep.subr.bf16.mxu0 0
    %584 = vmatpush1.bf16.msra.mxu0 0
    %585 = vmatprep.mubr.bf16.mxu0 0
    %586 = vmatmul.mubr.bf16.gmra.mrb[0].mxu0 %v548
    %v587 = vpop.f32.mrb[0].mxu0
    %v588 = vadd.f32 0.0, %v587
    %v589 = vpop.f32.mrb[0].mxu0
    %v590 = vpop.f32.mrb[0].mxu0
    %v591 = vpop.f32.mrb[0].mxu0
    %592 = vdwg.mxu0
    %593 = vrot.lane.b32.xlu0 %v235, 32
    %v594 = vpop.permute.xlu0 %593
    %595 = vrot.lane.b32.xlu0 %v236, 32
    %v596 = vpop.permute.xlu0 %595
    %v598 = vsel %vm52, %v594, 0
    %v601 = vsel %vm52, %v596, 0
    %603 = vmatprep.subr.bf16.mxu0 0
    %604 = vmatpush1.bf16.xpose.msra.mxu0 %v601
    %605 = vmatprep.subr.bf16.mxu0 0
    %606 = vmatpush1.bf16.xpose.msra.mxu0 0
    %607 = vmatprep.subr.bf16.mxu0 0
    %608 = vmatpush1.bf16.xpose.msra.mxu0 0
    %609 = vmatprep.subr.bf16.mxu0 0
    %610 = vmatpush1.bf16.xpose.msra.mxu0 0
    %611 = vmatprep.subr.bf16.mxu0 0
    %612 = vmatpush1.bf16.xpose.msra.mxu0 0
    %613 = vmatprep.subr.bf16.mxu0 0
    %614 = vmatpush1.bf16.xpose.msra.mxu0 0
    %615 = vmatprep.subr.bf16.mxu0 0
    %616 = vmatpush1.bf16.xpose.msra.mxu0 0
    %617 = vmatprep.subr.bf16.mxu0 0
    %618 = vmatpush1.bf16.xpose.msra.mxu0 0
    %619 = vmatprep.subr.bf16.mxu0 0
    %620 = vmatpush1.bf16.xpose.msra.mxu0 0
    %621 = vmatprep.subr.bf16.mxu0 0
    %622 = vmatpush1.bf16.xpose.msra.mxu0 0
    %623 = vmatprep.subr.bf16.mxu0 0
    %624 = vmatpush1.bf16.xpose.msra.mxu0 0
    %625 = vmatprep.subr.bf16.mxu0 0
    %626 = vmatpush1.bf16.xpose.msra.mxu0 0
    %627 = vmatprep.subr.bf16.mxu0 0
    %628 = vmatpush1.bf16.xpose.msra.mxu0 0
    %629 = vmatprep.subr.bf16.mxu0 0
    %630 = vmatpush1.bf16.xpose.msra.mxu0 0
    %631 = vmatprep.subr.bf16.mxu0 0
    %632 = vmatpush1.bf16.xpose.msra.mxu0 0
    %633 = vmatprep.subr.bf16.mxu0 0
    %634 = vmatpush1.bf16.xpose.msra.mxu0 0
    %635 = vmatprep.mubr.bf16.mxu0 0
    %636 = vmatmul.mubr.bf16.gmra.mrb[0].mxu0 %v598
    %v637 = vpop.f32.mrb[0].mxu0
    %v638 = vadd.f32 0.0, %v637
    %v639 = vpop.f32.mrb[0].mxu0
    %v640 = vpop.f32.mrb[0].mxu0
    %v641 = vpop.f32.mrb[0].mxu0
    %642 = vdwg.mxu0
    %v643 = vmul.f32 %v638, 0.17677669
    %v644 = vmul.f32 %v643, %v234
    %s645 = scalar_lea.vmem %s1, 12
    %v646 = vld [vmem:[%s645] sm:$0xf]
    %v647 = vunpack.c.l.bf16 %v646
    %v648 = vadd.f32 %v644, %v647
    %v649 = vmul.f32 %v648, -1000000.0
    %v650 = vsel %vm232, %v648, %v649
    %v651 = vsel %vm291, %v650, -inf
    %652 = vmax.xlane.f32.xlu0 %v651
    %v653 = vpop.xlane.xlu0 %652
    %v654 = vsub.f32 %v650, %v653
    %v655 = vmul.f32 %v654, 1.442695
    %v656 = vpow.pop %v655
    %v657 = vsel %vm291, %v656, 0.0
    %658 = vadd.xlane.f32.xlu0 %v657
    %v659 = vpop.xlane.xlu0 %658
    %v660 = vrcp.pop %v659
    %v661 = vmul.f32 %v656, %v660
    %v662 = vmul.f32 %v661, %v234
    %v663 = vpack.c.bf16 %v662, %v662
    %664 = vrot.lane.b32.xlu0 %v237, 32
    %v665 = vpop.permute.xlu0 %664
    %v667 = vsel %vm291, %v663, 0
    %v670 = vsel %vm308, %v665, 0
    %672 = vmatprep.subr.bf16.mxu0 0
    %673 = vmatpush1.bf16.msra.mxu0 %v670
    %674 = vmatprep.subr.bf16.mxu0 0
    %675 = vmatpush1.bf16.msra.mxu0 0
    %676 = vmatprep.subr.bf16.mxu0 0
    %677 = vmatpush1.bf16.msra.mxu0 0
    %678 = vmatprep.subr.bf16.mxu0 0
    %679 = vmatpush1.bf16.msra.mxu0 0
    %680 = vmatprep.subr.bf16.mxu0 0
    %681 = vmatpush1.bf16.msra.mxu0 0
    %682 = vmatprep.subr.bf16.mxu0 0
    %683 = vmatpush1.bf16.msra.mxu0 0
    %684 = vmatprep.subr.bf16.mxu0 0
    %685 = vmatpush1.bf16.msra.mxu0 0
    %686 = vmatprep.subr.bf16.mxu0 0
    %687 = vmatpush1.bf16.msra.mxu0 0
    %688 = vmatprep.subr.bf16.mxu0 0
    %689 = vmatpush1.bf16.msra.mxu0 0
    %690 = vmatprep.subr.bf16.mxu0 0
    %691 = vmatpush1.bf16.msra.mxu0 0
    %692 = vmatprep.subr.bf16.mxu0 0
    %693 = vmatpush1.bf16.msra.mxu0 0
    %694 = vmatprep.subr.bf16.mxu0 0
    %695 = vmatpush1.bf16.msra.mxu0 0
    %696 = vmatprep.subr.bf16.mxu0 0
    %697 = vmatpush1.bf16.msra.mxu0 0
    %698 = vmatprep.subr.bf16.mxu0 0
    %699 = vmatpush1.bf16.msra.mxu0 0
    %700 = vmatprep.subr.bf16.mxu0 0
    %701 = vmatpush1.bf16.msra.mxu0 0
    %702 = vmatprep.subr.bf16.mxu0 0
    %703 = vmatpush1.bf16.msra.mxu0 0
    %704 = vmatprep.mubr.bf16.mxu0 0
    %705 = vmatmul.mubr.bf16.gmra.mrb[0].mxu0 %v667
    %v706 = vpop.f32.mrb[0].mxu0
    %v707 = vadd.f32 0.0, %v706
    %v708 = vpop.f32.mrb[0].mxu0
    %v709 = vpop.f32.mrb[0].mxu0
    %v710 = vpop.f32.mrb[0].mxu0
    %711 = vdwg.mxu0
    %713 = vrot.lane.b32.xlu0 %v469, 32
    %v714 = vpop.permute.xlu0 %713
    %717 = vrot.lane.b32.xlu0 %v588, 64
    %v718 = vpop.permute.xlu0 %717
    %721 = vrot.lane.b32.xlu0 %v707, 96
    %v722 = vpop.permute.xlu0 %721
    %v724 = vsel %vm52, %v347, %v714
    %vm725 = vcmask 523264
    %v726 = vsel %vm725, %v724, %v718
    %vm727 = vcmask 785408
    %v728 = vsel %vm727, %v726, %v722
    %v729 = vpack.c.bf16 %v728, %v728
    %v730 = vld [vmem:[%s10] sm:$0xf]
    %v731 = vld [vmem:[%s10 + $0x4] sm:$0xf]
    %v732 = vld [vmem:[%s10 + $0x8] sm:$0xf]
    %v733 = vld [vmem:[%s10 + $0xc] sm:$0xf]
    %v734 = vld [vmem:[%s10 + $0x10] sm:$0xf]
    %v735 = vld [vmem:[%s10 + $0x14] sm:$0xf]
    %v736 = vld [vmem:[%s10 + $0x18] sm:$0xf]
    %v737 = vld [vmem:[%s10 + $0x1c] sm:$0xf]
    %v738 = vld [vmem:[%s10 + $0x20] sm:$0xf]
    %v739 = vld [vmem:[%s10 + $0x24] sm:$0xf]
    %v740 = vld [vmem:[%s10 + $0x28] sm:$0xf]
    %v741 = vld [vmem:[%s10 + $0x2c] sm:$0xf]
    %v742 = vld [vmem:[%s10 + $0x30] sm:$0xf]
    %v743 = vld [vmem:[%s10 + $0x34] sm:$0xf]
    %v744 = vld [vmem:[%s10 + $0x38] sm:$0xf]
    %v745 = vld [vmem:[%s10 + $0x3c] sm:$0xf]
    %v746 = vld [vmem:[%s11] sm:$0x1]
    %v748 = vlaneseq
    %v749 = vshrl.u32 %v748, 7
    %v750 = vsub.s32 0, %v749
    %v751 = vrot.slane %v746, %v750
    %v769 = vunpack.c.l.b16 %v730
    %v770 = vunpack.c.l.b16 %v731
    %v771 = vunpack.c.l.b16 %v732
    %v772 = vunpack.c.l.b16 %v733
    %v773 = vunpack.c.l.b16 %v734
    %v774 = vunpack.c.l.b16 %v735
    %v775 = vunpack.c.l.b16 %v736
    %v776 = vunpack.c.l.b16 %v737
    %v777 = vunpack.c.l.b16 %v738
    %v778 = vunpack.c.l.b16 %v739
    %v779 = vunpack.c.l.b16 %v740
    %v780 = vunpack.c.l.b16 %v741
    %v781 = vunpack.c.l.b16 %v742
    %v782 = vunpack.c.l.b16 %v743
    %v783 = vunpack.c.l.b16 %v744
    %v784 = vunpack.c.l.b16 %v745
    %v785 = vpack.c.b16 %v770, %v769
    %v786 = vpack.c.b16 %v772, %v771
    %v787 = vpack.c.b16 %v774, %v773
    %v788 = vpack.c.b16 %v776, %v775
    %v789 = vpack.c.b16 %v778, %v777
    %v790 = vpack.c.b16 %v780, %v779
    %v791 = vpack.c.b16 %v782, %v781
    %v792 = vpack.c.b16 %v784, %v783
    %801 = vmatprep.subr.bf16.mxu0 0
    %802 = vmatpush1.bf16.msra.mxu0 %v785
    %803 = vmatprep.subr.bf16.mxu0 0
    %804 = vmatpush1.bf16.msra.mxu0 %v786
    %805 = vmatprep.subr.bf16.mxu0 0
    %806 = vmatpush1.bf16.msra.mxu0 %v787
    %807 = vmatprep.subr.bf16.mxu0 0
    %808 = vmatpush1.bf16.msra.mxu0 %v788
    %809 = vmatprep.subr.bf16.mxu0 0
    %810 = vmatpush1.bf16.msra.mxu0 %v789
    %811 = vmatprep.subr.bf16.mxu0 0
    %812 = vmatpush1.bf16.msra.mxu0 %v790
    %813 = vmatprep.subr.bf16.mxu0 0
    %814 = vmatpush1.bf16.msra.mxu0 %v791
    %815 = vmatprep.subr.bf16.mxu0 0
    %816 = vmatpush1.bf16.msra.mxu0 %v792
    %817 = vmatprep.subr.bf16.mxu0 0
    %818 = vmatpush1.bf16.msra.mxu0 0
    %819 = vmatprep.subr.bf16.mxu0 0
    %820 = vmatpush1.bf16.msra.mxu0 0
    %821 = vmatprep.subr.bf16.mxu0 0
    %822 = vmatpush1.bf16.msra.mxu0 0
    %823 = vmatprep.subr.bf16.mxu0 0
    %824 = vmatpush1.bf16.msra.mxu0 0
    %825 = vmatprep.subr.bf16.mxu0 0
    %826 = vmatpush1.bf16.msra.mxu0 0
    %827 = vmatprep.subr.bf16.mxu0 0
    %828 = vmatpush1.bf16.msra.mxu0 0
    %829 = vmatprep.subr.bf16.mxu0 0
    %830 = vmatpush1.bf16.msra.mxu0 0
    %831 = vmatprep.subr.bf16.mxu0 0
    %832 = vmatpush1.bf16.msra.mxu0 0
    %833 = vmatprep.mubr.bf16.mxu0 0
    %834 = vmatmul.mubr.bf16.gmra.mrb[0].mxu0 %v729
    %v835 = vpop.f32.mrb[0].mxu0
    %v836 = vadd.f32 %v751, %v835
    %v837 = vpop.f32.mrb[0].mxu0
    %v838 = vpop.f32.mrb[0].mxu0
    %v839 = vpop.f32.mrb[0].mxu0
    %840 = vdwg.mxu0
    %v841 = vadd.f32 %v836, %v49
    %v842 = vld [vmem:[%s6] sm:$0x1]
    %v843 = vld [vmem:[%s7] sm:$0x1]
    %v844 = vsel %vm52, %v841, 0.0
    %845 = vadd.xlane.f32.xlu0 %v844
    %v846 = vpop.xlane.xlu0 %845
    %v847 = vmul.f32 %v846, %v56
    %v848 = vsub.f32 %v841, %v847
    %v849 = vmul.f32 %v848, %v848
    %v850 = vsel %vm52, %v849, 0.0
    %851 = vadd.xlane.f32.xlu0 %v850
    %v852 = vpop.xlane.xlu0 %851
    %v853 = vmul.f32 %v852, %v56
    %v854 = vadd.f32 %v853, 1e-05
    %v855 = vrsqrt.pop %v854
    %v856 = vmul.f32 %v848, %v855
    %v858 = vlaneseq
    %v859 = vshrl.u32 %v858, 7
    %v860 = vsub.s32 0, %v859
    %v861 = vrot.slane %v842, %v860
    %v863 = vmul.f32 %v856, %v861
    %v865 = vlaneseq
    %v866 = vshrl.u32 %v865, 7
    %v867 = vsub.s32 0, %v866
    %v868 = vrot.slane %v843, %v867
    %v870 = vadd.f32 %v863, %v868
    %v871 = vpack.c.bf16 %v870, %v870
    %v872 = vld [vmem:[%s12] sm:$0xf]
    %v873 = vld [vmem:[%s12 + $0x4] sm:$0xf]
    %v874 = vld [vmem:[%s12 + $0x8] sm:$0xf]
    %v875 = vld [vmem:[%s12 + $0xc] sm:$0xf]
    %v876 = vld [vmem:[%s13] sm:$0x1]
    %v878 = vlaneseq
    %v879 = vshrl.u32 %v878, 7
    %v880 = vsub.s32 0, %v879
    %v881 = vrot.slane %v876, %v880
    %v887 = vunpack.c.l.b16 %v872
    %v888 = vunpack.c.l.b16 %v873
    %v889 = vunpack.c.l.b16 %v874
    %v890 = vunpack.c.l.b16 %v875
    %v891 = vpack.c.b16 %v888, %v887
    %v892 = vpack.c.b16 %v890, %v889
    %v896 = vsel %vm52, %v871, 0
    %898 = vmatprep.subr.bf16.mxu0 0
    %899 = vmatpush1.bf16.msra.mxu0 %v891
    %900 = vmatprep.subr.bf16.mxu0 0
    %901 = vmatpush1.bf16.msra.mxu0 %v892
    %902 = vmatprep.subr.bf16.mxu0 0
    %903 = vmatpush1.bf16.msra.mxu0 0
    %904 = vmatprep.subr.bf16.mxu0 0
    %905 = vmatpush1.bf16.msra.mxu0 0
    %906 = vmatprep.subr.bf16.mxu0 0
    %907 = vmatpush1.bf16.msra.mxu0 0
    %908 = vmatprep.subr.bf16.mxu0 0
    %909 = vmatpush1.bf16.msra.mxu0 0
    %910 = vmatprep.subr.bf16.mxu0 0
    %911 = vmatpush1.bf16.msra.mxu0 0
    %912 = vmatprep.subr.bf16.mxu0 0
    %913 = vmatpush1.bf16.msra.mxu0 0
    %914 = vmatprep.subr.bf16.mxu0 0
    %915 = vmatpush1.bf16.msra.mxu0 0
    %916 = vmatprep.subr.bf16.mxu0 0
    %917 = vmatpush1.bf16.msra.mxu0 0
    %918 = vmatprep.subr.bf16.mxu0 0
    %919 = vmatpush1.bf16.msra.mxu0 0
    %920 = vmatprep.subr.bf16.mxu0 0
    %921 = vmatpush1.bf16.msra.mxu0 0
    %922 = vmatprep.subr.bf16.mxu0 0
    %923 = vmatpush1.bf16.msra.mxu0 0
    %924 = vmatprep.subr.bf16.mxu0 0
    %925 = vmatpush1.bf16.msra.mxu0 0
    %926 = vmatprep.subr.bf16.mxu0 0
    %927 = vmatpush1.bf16.msra.mxu0 0
    %928 = vmatprep.subr.bf16.mxu0 0
    %929 = vmatpush1.bf16.msra.mxu0 0
    %930 = vmatprep.mubr.bf16.mxu0 0
    %931 = vmatmul.mubr.bf16.gmra.mrb[0].mxu0 %v896
    %v932 = vpop.f32.mrb[0].mxu0
    %v933 = vadd.f32 %v881, %v932
    %v934 = vpop.f32.mrb[0].mxu0
    %v935 = vpop.f32.mrb[0].mxu0
    %v936 = vpop.f32.mrb[0].mxu0
    %937 = vdwg.mxu0
    %v938 = vadd.f32 %v933, %v841
    %939 = vst.msk [vmem:[#allocation2] sm:$0xff] %vm52, %v938
    // Predicated region
    $region58: #{tpu_custom_call.1} parent=1 // pred_check
      _
    $region59: #{tpu_custom_call.1} parent=1 // pred_check_branch
      %941 = sbr.rel (0) target = $region61
    $region60: #{tpu_custom_call.1} parent=1 // pred_region
      %s943 = ssub.s32 128, 128
      %944 = vsyncadd [#allocation3], %s943
      %s946 = sshll.u32 [#allocation2], 4
      %s947 = int_to_ptr.vmem [resolvable:$true] %s946
      %949 = dma.vmem_to_hbm [thread:$0]  %s947, 128, %s14, [#allocation3]
    $region61: #{tpu_custom_call.1} parent=1 // pred_fallthru
      _
    // Predicated region
    $region62: #{tpu_custom_call.1} parent=1 // pred_check
      _
    $region63: #{tpu_custom_call.1} parent=1 // pred_check_branch
      %951 = sbr.rel (0) target = $region65
    $region64: #{tpu_custom_call.1} parent=1 // pred_region
      %952 = dma.done [#allocation3], 128
    $region65: #{tpu_custom_call.1} parent=1 // pred_fallthru
      _
    %953 = vsyncpa [#allocation3], 1

</llo_original>
